<compile_context>
chip_gen: v7x
topology: tpu7x:2x2x1
jax: 0.10.0
libtpu: 0.0.40
codegen_flags: <defaults>
</compile_context>

<pallas_src>
import numpy as np
import jax
import jax.numpy as jnp
from jax.experimental import pallas as pl
from jax.experimental.pallas import tpu as pltpu


# --------------------------------------------------------------------------
# Fused all-layers kernel: grid = (batch, layer).  The residual stream is
# carried across the layer axis in a VMEM scratch.
# --------------------------------------------------------------------------
def _layers_kernel(x_ref, scale_ref, wqkv_ref, wo_ref, bo_ref,
                   cos_ref, sin_ref, perm_ref, mask_ref,
                   w1_ref, b1_ref, wg_ref, bg_ref, wl_ref, bl_ref, beta_ref,
                   o_ref, carry_ref):
    layer = pl.program_id(1)
    n_layers = pl.num_programs(1)
    H = wqkv_ref.shape[1]
    S = x_ref.shape[1]
    QK = cos_ref.shape[1]            # 2 * Dh  (Q|K slab width)
    Dh = QK // 2

    # Layer 0 loads the embeddings; later layers reuse the VMEM-resident carry.
    @pl.when(layer == 0)
    def _():
        carry_ref[...] = x_ref[0]

    x = carry_ref[...]               # (S, D) float32
    scale = scale_ref[0]             # (S, D)

    # Reference RMSNorm: per-batch Frobenius mean over the whole (S, D) slab.
    def rms(y):
        return scale * (y * jax.lax.rsqrt(jnp.mean(y * y)))

    xn = rms(x)

    # ---- fused per-head Q|K|V projection (one batched bf16 MXU matmul) ----
    xn_h = jnp.broadcast_to(xn.astype(jnp.bfloat16), (H, S, xn.shape[-1]))
    qkv = jnp.einsum('hsd,hde->hse', xn_h, wqkv_ref[0],
                     preferred_element_type=jnp.float32)     # (H, S, 3*Dh)
    qk = qkv[:, :, :QK].astype(jnp.bfloat16)                 # (H, S, 2*Dh)
    v = qkv[:, :, QK:].astype(jnp.bfloat16)                  # (H, S, Dh)

    # ---- RoPE: exact pair-swap via constant 0/1 permutation matmul (idle
    # MXU), then elementwise cos / signed-sin combine.  1/sqrt(d_model) is
    # already folded into the Q weight columns.
    perm_h = jnp.broadcast_to(perm_ref[...], (H, QK, QK))
    qk_sw = jnp.einsum('hse,hef->hsf', qk, perm_h,
                       preferred_element_type=jnp.float32)
    qk_rot = (qk * cos_ref[...][None] + qk_sw * sin_ref[...][None]
              ).astype(jnp.bfloat16)
    q_r = qk_rot[:, :, :Dh]
    k_r = qk_rot[:, :, Dh:]

    # ---- causal softmax attention, all heads batched -----------------------
    s = jnp.einsum('hsd,htd->hst', q_r, k_r,
                   preferred_element_type=jnp.float32)       # (H, S, S)
    s = s + mask_ref[...][None]
    p = jnp.exp(s - jnp.max(s, axis=-1, keepdims=True))
    p = p * pl.reciprocal(jnp.sum(p, axis=-1, keepdims=True), approx=True)
    ctx = jnp.einsum('hst,htd->hsd', p.astype(jnp.bfloat16), v,
                     preferred_element_type=jnp.float32)     # (H, S, Dh)

    # Output projection per head, summed: concat(heads) @ Wo == sum_h h @ Wo_h.
    attn = jnp.einsum('hsd,hdm->hsm', ctx.astype(jnp.bfloat16), wo_ref[0],
                      preferred_element_type=jnp.float32)
    attn = jnp.sum(attn, axis=0) + bo_ref[0]

    x1 = xn + attn                   # residual on the post-RMS stream (as in ref)
    x2 = rms(x1)

    # ---- feedforward: Linear(D,D) -> SwiGLU(D) ------------------------------
    x2b = x2.astype(jnp.bfloat16)
    h1 = jnp.dot(x2b, w1_ref[0], preferred_element_type=jnp.float32) + b1_ref[0]
    h1b = h1.astype(jnp.bfloat16)
    beta = beta_ref[layer]           # scalar from SMEM
    gate = jnp.dot(h1b, wg_ref[0], preferred_element_type=jnp.float32) + bg_ref[0]
    lin = jnp.dot(h1b, wl_ref[0], preferred_element_type=jnp.float32) + bl_ref[0]
    ff = gate * jax.nn.sigmoid(beta * gate) * lin

    new_x = x2 + ff
    carry_ref[...] = new_x

    @pl.when(layer == n_layers - 1)
    def _():
        o_ref[0] = new_x.astype(o_ref.dtype)


def llama_layers(x, params):
    B, S, D = x.shape
    blk = params['blocks']
    L, H = blk['wqkv'].shape[0], blk['wqkv'].shape[1]
    E3 = blk['wqkv'].shape[3]        # 3 * Dh
    Dh = blk['wo'].shape[2]
    QK = 2 * Dh
    cos = params['cos'][:S]
    sin = params['sin'][:S]
    perm = params['rope_perm']
    mask = params['causal'][:S, :S]
    scale = blk['rms_scale'][:, :S, :]

    return pl.pallas_call(
        _layers_kernel,
        out_shape=jax.ShapeDtypeStruct((B, S, D), x.dtype),
        grid=(B, L),
        in_specs=[
            pl.BlockSpec((1, S, D), lambda b, l: (b, 0, 0)),          # x (layer-0 input)
            pl.BlockSpec((1, S, D), lambda b, l: (l, 0, 0)),          # rms scale
            pl.BlockSpec((1, H, D, E3), lambda b, l: (l, 0, 0, 0)),   # wqkv (bf16)
            pl.BlockSpec((1, H, Dh, D), lambda b, l: (l, 0, 0, 0)),   # wo   (bf16)
            pl.BlockSpec((1, 1, D), lambda b, l: (l, 0, 0)),          # bo
            pl.BlockSpec((S, QK), lambda b, l: (0, 0)),               # cos  (Q|K slab)
            pl.BlockSpec((S, QK), lambda b, l: (0, 0)),               # signed sin
            pl.BlockSpec((QK, QK), lambda b, l: (0, 0)),              # pair-swap perm
            pl.BlockSpec((S, S), lambda b, l: (0, 0)),                # causal bias
            pl.BlockSpec((1, D, D), lambda b, l: (l, 0, 0)),          # ff w1 (bf16)
            pl.BlockSpec((1, 1, D), lambda b, l: (l, 0, 0)),          # ff b1
            pl.BlockSpec((1, D, D), lambda b, l: (l, 0, 0)),          # swiglu wg (bf16)
            pl.BlockSpec((1, 1, D), lambda b, l: (l, 0, 0)),          # swiglu bg
            pl.BlockSpec((1, D, D), lambda b, l: (l, 0, 0)),          # swiglu wl (bf16)
            pl.BlockSpec((1, 1, D), lambda b, l: (l, 0, 0)),          # swiglu bl
            pl.BlockSpec(memory_space=pltpu.MemorySpace.SMEM),        # beta (L,)
        ],
        out_specs=pl.BlockSpec((1, S, D), lambda b, l: (b, 0, 0)),
        scratch_shapes=[pltpu.VMEM((S, D), jnp.float32)],             # residual carry
        compiler_params=pltpu.CompilerParams(
            dimension_semantics=("parallel", "arbitrary")),
    )(x, scale, blk['wqkv'], blk['wo'], blk['bo'], cos, sin, perm, mask,
      blk['w1'], blk['b1'], blk['wg'], blk['bg'], blk['wl'], blk['bl'],
      blk['beta'])


# --------------------------------------------------------------------------
# Fused final FFN kernel: Linear(D,D) -> SwiGLU(D) -> Linear(D, vocab).
# --------------------------------------------------------------------------
def _ffn_kernel(x_ref, w1_ref, b1_ref, wg_ref, bg_ref, wl_ref, bl_ref,
                beta_ref, w2_ref, b2_ref, o_ref):
    x = x_ref[0].astype(jnp.bfloat16)                                 # (S, D)
    h1 = jnp.dot(x, w1_ref[...], preferred_element_type=jnp.float32) + b1_ref[...]
    h1b = h1.astype(jnp.bfloat16)
    beta = beta_ref[0]
    gate = jnp.dot(h1b, wg_ref[...], preferred_element_type=jnp.float32) + bg_ref[...]
    lin = jnp.dot(h1b, wl_ref[...], preferred_element_type=jnp.float32) + bl_ref[...]
    sw = (gate * jax.nn.sigmoid(beta * gate) * lin).astype(jnp.bfloat16)
    o_ref[0] = (jnp.dot(sw, w2_ref[...], preferred_element_type=jnp.float32)
                + b2_ref[...]).astype(o_ref.dtype)


def llama_ffn(x, params):
    B, S, D = x.shape
    V = params['ffn_w2'].shape[1]
    return pl.pallas_call(
        _ffn_kernel,
        out_shape=jax.ShapeDtypeStruct((B, S, V), x.dtype),
        grid=(B,),
        in_specs=[
            pl.BlockSpec((1, S, D), lambda b: (b, 0, 0)),
            pl.BlockSpec((D, D), lambda b: (0, 0)),
            pl.BlockSpec((1, D), lambda b: (0, 0)),
            pl.BlockSpec((D, D), lambda b: (0, 0)),
            pl.BlockSpec((1, D), lambda b: (0, 0)),
            pl.BlockSpec((D, D), lambda b: (0, 0)),
            pl.BlockSpec((1, D), lambda b: (0, 0)),
            pl.BlockSpec(memory_space=pltpu.MemorySpace.SMEM),        # beta
            pl.BlockSpec((D, V), lambda b: (0, 0)),
            pl.BlockSpec((1, V), lambda b: (0, 0)),
        ],
        out_specs=pl.BlockSpec((1, S, V), lambda b: (b, 0, 0)),
        compiler_params=pltpu.CompilerParams(dimension_semantics=("parallel",)),
    )(x, params['ffn_w1'], params['ffn_b1'],
      params['ffn_sw_wg'], params['ffn_sw_bg'],
      params['ffn_sw_wl'], params['ffn_sw_bl'],
      params['ffn_sw_beta'],
      params['ffn_w2'], params['ffn_b2'])


# --------------------------------------------------------------------------
# RoPE / mask tables.  Reproduces the reference get_rotary_matrix (incl. the
# (i-1) exponent quirk) as a cos table, a signed-sin table and a constant
# pair-swap permutation, all for the concatenated [Q | K] slab (S, 2*Dh).
# --------------------------------------------------------------------------
def rope_tables(context_window, d_model):
    cos = np.zeros((context_window, d_model), np.float32)
    sin = np.zeros((context_window, d_model), np.float32)
    for i in range(d_model // 2):
        theta = 10000.0 ** (-2.0 * (i - 1) / d_model)
        for pos in range(context_window):
            m_theta = pos * theta
            cos[pos, 2 * i] = np.cos(m_theta)
            cos[pos, 2 * i + 1] = np.cos(m_theta)
            sin[pos, 2 * i] = np.sin(m_theta)        # out[2i]   += x[2i+1]*sin
            sin[pos, 2 * i + 1] = -np.sin(m_theta)   # out[2i+1] -= x[2i]*sin
    cos_qk = np.tile(cos, (1, 2))                    # (S, 2*Dh): Q and K slabs
    sin_qk = np.tile(sin, (1, 2))
    idx = np.arange(2 * d_model)
    perm = ((idx[:, None] ^ 1) == idx[None, :]).astype(np.float32)  # pair swap
    return (jnp.asarray(cos_qk), jnp.asarray(sin_qk),
            jnp.asarray(perm, dtype=jnp.bfloat16))


def causal_bias(context_window):
    r = np.arange(context_window)
    m = np.where(r[None, :] <= r[:, None], 0.0, -1e30).astype(np.float32)
    return jnp.asarray(m)


# --------------------------------------------------------------------------
# Model composition (glue) + parameter init.
# --------------------------------------------------------------------------
def llama_forward(idx, params):
    # TODO(synk): embedding gather stays in plain JAX (data-dependent gather).
    x = params['emb'][idx]                           # (B, S, D) float32
    x = llama_layers(x, params)                      # all blocks, one kernel
    return llama_ffn(x, params)                      # (B, S, vocab)


def init_params(key, context_window, vocab_size, d_model, n_layers, n_heads):
    keys = jax.random.split(key, 11 * n_layers + 12)
    it = iter(keys)

    def w(shape, scale=0.05):
        return jax.random.normal(next(it), shape, jnp.float32) * scale

    cos_qk, sin_qk, perm = rope_tables(context_window, d_model)
    inv_sqrt_d = float(d_model) ** -0.5

    wqkv, wo, bo = [], [], []
    w1, b1, wg, bg, wl, bl = [], [], [], [], [], []
    for _ in range(n_layers):
        wq = w((n_heads, d_model, d_model)) * inv_sqrt_d   # fold SDPA 1/sqrt(d)
        wk = w((n_heads, d_model, d_model))
        wv = w((n_heads, d_model, d_model))
        wqkv.append(jnp.concatenate([wq, wk, wv], axis=-1))   # (H, D, 3*Dh)
        wo.append(w((n_heads, d_model, d_model)))             # (H, Dh, D)
        bo.append(w((1, d_model)))
        w1.append(w((d_model, d_model))); b1.append(w((1, d_model)))
        wg.append(w((d_model, d_model))); bg.append(w((1, d_model)))
        wl.append(w((d_model, d_model))); bl.append(w((1, d_model)))

    blocks = dict(
        rms_scale=jnp.ones((n_layers, context_window, d_model), jnp.float32),
        wqkv=jnp.stack(wqkv).astype(jnp.bfloat16),             # (L, H, D, 3*Dh)
        wo=jnp.stack(wo).astype(jnp.bfloat16),                 # (L, H, Dh, D)
        bo=jnp.stack(bo),                                      # (L, 1, D)
        w1=jnp.stack(w1).astype(jnp.bfloat16), b1=jnp.stack(b1),
        wg=jnp.stack(wg).astype(jnp.bfloat16), bg=jnp.stack(bg),
        wl=jnp.stack(wl).astype(jnp.bfloat16), bl=jnp.stack(bl),
        beta=jnp.ones((n_layers,), jnp.float32),
    )
    return dict(
        emb=w((vocab_size, d_model), 1.0),
        cos=cos_qk, sin=sin_qk, rope_perm=perm,
        causal=causal_bias(context_window),
        blocks=blocks,
        ffn_w1=w((d_model, d_model)).astype(jnp.bfloat16),
        ffn_b1=w((1, d_model)),
        ffn_sw_wg=w((d_model, d_model)).astype(jnp.bfloat16),
        ffn_sw_bg=w((1, d_model)),
        ffn_sw_wl=w((d_model, d_model)).astype(jnp.bfloat16),
        ffn_sw_bl=w((1, d_model)),
        ffn_sw_beta=jnp.ones((1,), jnp.float32),
        ffn_w2=w((d_model, vocab_size)).astype(jnp.bfloat16),
        ffn_b2=w((1, vocab_size)),
    )


if __name__ == "__main__":
    context_window = 16
    vocab_size = 64
    d_model = 32
    n_layers = 2
    n_heads = 2
    B, S = 2, 16                                     # seq == context_window

    key = jax.random.PRNGKey(0)
    pkey, ikey = jax.random.split(key)
    params = init_params(pkey, context_window, vocab_size, d_model,
                         n_layers, n_heads)
    idx = jax.random.randint(ikey, (B, S), 0, vocab_size, dtype=jnp.int32)

    fwd = jax.jit(llama_forward)
    logits = jax.block_until_ready(fwd(idx, params))
    assert logits.shape == (B, S, vocab_size)
    assert bool(jnp.all(jnp.isfinite(logits)))
    print("KERNEL_OK")
</pallas_src>

<mosaic_0001>
module attributes {stable_mosaic.version = 11 : i64} {
  func.func @_ffn_kernel(%arg0: i32, %arg1: memref<1x16x32xf32, #tpu.memory_space<vmem>>, %arg2: memref<32x32xbf16, #tpu.memory_space<vmem>>, %arg3: memref<1x32xf32, #tpu.memory_space<vmem>>, %arg4: memref<32x32xbf16, #tpu.memory_space<vmem>>, %arg5: memref<1x32xf32, #tpu.memory_space<vmem>>, %arg6: memref<32x32xbf16, #tpu.memory_space<vmem>>, %arg7: memref<1x32xf32, #tpu.memory_space<vmem>>, %arg8: memref<1xf32, #tpu.memory_space<smem>>, %arg9: memref<32x64xbf16, #tpu.memory_space<vmem>>, %arg10: memref<1x64xf32, #tpu.memory_space<vmem>>, %arg11: memref<1x16x64xf32, #tpu.memory_space<vmem>>) attributes {dimension_semantics = [#tpu.dimension_semantics<parallel>], iteration_bounds = array<i64: 2>, scalar_prefetch = 0 : i64, scratch_operands = 0 : i64, tpu.core_type = #tpu.core_type<tc>, window_params = [{transform_indices = @transform_0, window_bounds = array<i64: 1, 16, 32>}, {pipeline_mode = #tpu.pipeline_mode<synchronous>, transform_indices = @transform_1, window_bounds = array<i64: 32, 32>}, {pipeline_mode = #tpu.pipeline_mode<synchronous>, transform_indices = @transform_2, window_bounds = array<i64: 1, 32>}, {pipeline_mode = #tpu.pipeline_mode<synchronous>, transform_indices = @transform_3, window_bounds = array<i64: 32, 32>}, {pipeline_mode = #tpu.pipeline_mode<synchronous>, transform_indices = @transform_4, window_bounds = array<i64: 1, 32>}, {pipeline_mode = #tpu.pipeline_mode<synchronous>, transform_indices = @transform_5, window_bounds = array<i64: 32, 32>}, {pipeline_mode = #tpu.pipeline_mode<synchronous>, transform_indices = @transform_6, window_bounds = array<i64: 1, 32>}, {transform_indices = @transform_7, window_bounds = array<i64: 1>}, {pipeline_mode = #tpu.pipeline_mode<synchronous>, transform_indices = @transform_8, window_bounds = array<i64: 32, 64>}, {pipeline_mode = #tpu.pipeline_mode<synchronous>, transform_indices = @transform_9, window_bounds = array<i64: 1, 64>}, {transform_indices = @transform_10, window_bounds = array<i64: 1, 16, 64>}]} {
    %c0 = arith.constant 0 : index
    %c0_0 = arith.constant 0 : index
    %c0_1 = arith.constant 0 : index
    %0 = vector.load %arg1[%c0, %c0_0, %c0_1] : memref<1x16x32xf32, #tpu.memory_space<vmem>>, vector<1x16x32xf32>
    %1 = vector.shape_cast %0 : vector<1x16x32xf32> to vector<16x32xf32>
    %2 = arith.truncf %1 : vector<16x32xf32> to vector<16x32xbf16>
    %c0_2 = arith.constant 0 : index
    %c0_3 = arith.constant 0 : index
    %3 = vector.load %arg2[%c0_2, %c0_3] : memref<32x32xbf16, #tpu.memory_space<vmem>>, vector<32x32xbf16>
    %cst = arith.constant dense<0.000000e+00> : vector<16x32xf32>
    %4 = tpu.matmul %2, %3, %cst {dimension_numbers = #tpu.dot_dimension_numbers<[1], [0], [0], [1], [0, 0, 1, 1], [], []>} : vector<16x32xbf16>, vector<32x32xbf16>, vector<16x32xf32> -> vector<16x32xf32>
    %c0_4 = arith.constant 0 : index
    %c0_5 = arith.constant 0 : index
    %5 = vector.load %arg3[%c0_4, %c0_5] : memref<1x32xf32, #tpu.memory_space<vmem>>, vector<1x32xf32>
    %6 = vector.broadcast %5 : vector<1x32xf32> to vector<16x32xf32>
    %7 = arith.addf %4, %6 : vector<16x32xf32>
    %8 = arith.truncf %7 : vector<16x32xf32> to vector<16x32xbf16>
    %c0_6 = arith.constant 0 : index
    %9 = memref.load %arg8[%c0_6] : memref<1xf32, #tpu.memory_space<smem>>
    %c0_7 = arith.constant 0 : index
    %c0_8 = arith.constant 0 : index
    %10 = vector.load %arg4[%c0_7, %c0_8] : memref<32x32xbf16, #tpu.memory_space<vmem>>, vector<32x32xbf16>
    %cst_9 = arith.constant dense<0.000000e+00> : vector<16x32xf32>
    %11 = tpu.matmul %8, %10, %cst_9 {dimension_numbers = #tpu.dot_dimension_numbers<[1], [0], [0], [1], [0, 0, 1, 1], [], []>} : vector<16x32xbf16>, vector<32x32xbf16>, vector<16x32xf32> -> vector<16x32xf32>
    %c0_10 = arith.constant 0 : index
    %c0_11 = arith.constant 0 : index
    %12 = vector.load %arg5[%c0_10, %c0_11] : memref<1x32xf32, #tpu.memory_space<vmem>>, vector<1x32xf32>
    %13 = vector.broadcast %12 : vector<1x32xf32> to vector<16x32xf32>
    %14 = arith.addf %11, %13 : vector<16x32xf32>
    %c0_12 = arith.constant 0 : index
    %c0_13 = arith.constant 0 : index
    %15 = vector.load %arg6[%c0_12, %c0_13] : memref<32x32xbf16, #tpu.memory_space<vmem>>, vector<32x32xbf16>
    %cst_14 = arith.constant dense<0.000000e+00> : vector<16x32xf32>
    %16 = tpu.matmul %8, %15, %cst_14 {dimension_numbers = #tpu.dot_dimension_numbers<[1], [0], [0], [1], [0, 0, 1, 1], [], []>} : vector<16x32xbf16>, vector<32x32xbf16>, vector<16x32xf32> -> vector<16x32xf32>
    %c0_15 = arith.constant 0 : index
    %c0_16 = arith.constant 0 : index
    %17 = vector.load %arg7[%c0_15, %c0_16] : memref<1x32xf32, #tpu.memory_space<vmem>>, vector<1x32xf32>
    %18 = vector.broadcast %17 : vector<1x32xf32> to vector<16x32xf32>
    %19 = arith.addf %16, %18 : vector<16x32xf32>
    %20 = vector.broadcast %9 : f32 to vector<16x32xf32>
    %21 = arith.mulf %20, %14 : vector<16x32xf32>
    %22 = arith.negf %21 : vector<16x32xf32>
    %23 = math.exp %22 : vector<16x32xf32>
    %cst_17 = arith.constant 1.000000e+00 : f32
    %24 = vector.broadcast %cst_17 : f32 to vector<16x32xf32>
    %25 = arith.addf %24, %23 : vector<16x32xf32>
    %26 = arith.divf %24, %25 : vector<16x32xf32>
    %27 = arith.mulf %14, %26 : vector<16x32xf32>
    %28 = arith.mulf %27, %19 : vector<16x32xf32>
    %29 = arith.truncf %28 : vector<16x32xf32> to vector<16x32xbf16>
    %c0_18 = arith.constant 0 : index
    %c0_19 = arith.constant 0 : index
    %30 = vector.load %arg9[%c0_18, %c0_19] : memref<32x64xbf16, #tpu.memory_space<vmem>>, vector<32x64xbf16>
    %cst_20 = arith.constant dense<0.000000e+00> : vector<16x64xf32>
    %31 = tpu.matmul %29, %30, %cst_20 {dimension_numbers = #tpu.dot_dimension_numbers<[1], [0], [0], [1], [0, 0, 1, 1], [], []>} : vector<16x32xbf16>, vector<32x64xbf16>, vector<16x64xf32> -> vector<16x64xf32>
    %c0_21 = arith.constant 0 : index
    %c0_22 = arith.constant 0 : index
    %32 = vector.load %arg10[%c0_21, %c0_22] : memref<1x64xf32, #tpu.memory_space<vmem>>, vector<1x64xf32>
    %33 = vector.broadcast %32 : vector<1x64xf32> to vector<16x64xf32>
    %34 = arith.addf %31, %33 : vector<16x64xf32>
    %c0_23 = arith.constant 0 : index
    %c0_24 = arith.constant 0 : index
    %c0_25 = arith.constant 0 : index
    %35 = vector.load %arg11[%c0_23, %c0_24, %c0_25] : memref<1x16x64xf32, #tpu.memory_space<vmem>>, vector<1x16x64xf32>
    %36 = vector.shape_cast %35 : vector<1x16x64xf32> to vector<16x64xf32>
    %37 = vector.shape_cast %34 : vector<16x64xf32> to vector<1x16x64xf32>
    tpu.vector_store %arg11[%c0_23, %c0_24, %c0_25], %37 {strides = array<i32>} : memref<1x16x64xf32, #tpu.memory_space<vmem>>, vector<1x16x64xf32>,
    return
  }
  func.func @transform_0(%arg0: i32) -> (i32, i32, i32) {
    %c0_i32 = arith.constant 0 : i32
    %c0_i32_0 = arith.constant 0 : i32
    %c0_i32_1 = arith.constant 0 : i32
    return %arg0, %c0_i32, %c0_i32_0 : i32, i32, i32
  }
  func.func @transform_1(%arg0: i32) -> (i32, i32) {
    %c0_i32 = arith.constant 0 : i32
    %c0_i32_0 = arith.constant 0 : i32
    %c0_i32_1 = arith.constant 0 : i32
    return %c0_i32, %c0_i32_0 : i32, i32
  }
  func.func @transform_2(%arg0: i32) -> (i32, i32) {
    %c0_i32 = arith.constant 0 : i32
    %c0_i32_0 = arith.constant 0 : i32
    %c0_i32_1 = arith.constant 0 : i32
    return %c0_i32, %c0_i32_0 : i32, i32
  }
  func.func @transform_3(%arg0: i32) -> (i32, i32) {
    %c0_i32 = arith.constant 0 : i32
    %c0_i32_0 = arith.constant 0 : i32
    %c0_i32_1 = arith.constant 0 : i32
    return %c0_i32, %c0_i32_0 : i32, i32
  }
  func.func @transform_4(%arg0: i32) -> (i32, i32) {
    %c0_i32 = arith.constant 0 : i32
    %c0_i32_0 = arith.constant 0 : i32
    %c0_i32_1 = arith.constant 0 : i32
    return %c0_i32, %c0_i32_0 : i32, i32
  }
  func.func @transform_5(%arg0: i32) -> (i32, i32) {
    %c0_i32 = arith.constant 0 : i32
    %c0_i32_0 = arith.constant 0 : i32
    %c0_i32_1 = arith.constant 0 : i32
    return %c0_i32, %c0_i32_0 : i32, i32
  }
  func.func @transform_6(%arg0: i32) -> (i32, i32) {
    %c0_i32 = arith.constant 0 : i32
    %c0_i32_0 = arith.constant 0 : i32
    %c0_i32_1 = arith.constant 0 : i32
    return %c0_i32, %c0_i32_0 : i32, i32
  }
  func.func @transform_7(%arg0: i32) -> i32 {
    %c0_i32 = arith.constant 0 : i32
    %c0_i32_0 = arith.constant 0 : i32
    return %c0_i32 : i32
  }
  func.func @transform_8(%arg0: i32) -> (i32, i32) {
    %c0_i32 = arith.constant 0 : i32
    %c0_i32_0 = arith.constant 0 : i32
    %c0_i32_1 = arith.constant 0 : i32
    return %c0_i32, %c0_i32_0 : i32, i32
  }
  func.func @transform_9(%arg0: i32) -> (i32, i32) {
    %c0_i32 = arith.constant 0 : i32
    %c0_i32_0 = arith.constant 0 : i32
    %c0_i32_1 = arith.constant 0 : i32
    return %c0_i32, %c0_i32_0 : i32, i32
  }
  func.func @transform_10(%arg0: i32) -> (i32, i32, i32) {
    %c0_i32 = arith.constant 0 : i32
    %c0_i32_0 = arith.constant 0 : i32
    %c0_i32_1 = arith.constant 0 : i32
    return %arg0, %c0_i32, %c0_i32_0 : i32, i32, i32
  }
}

module attributes {stable_mosaic.version = 11 : i64} {
  func.func @_layers_kernel(%arg0: i32, %arg1: i32, %arg2: memref<1x16x32xf32, #tpu.memory_space<vmem>>, %arg3: memref<1x16x32xf32, #tpu.memory_space<vmem>>, %arg4: memref<1x2x32x96xbf16, #tpu.memory_space<vmem>>, %arg5: memref<1x2x32x32xbf16, #tpu.memory_space<vmem>>, %arg6: memref<1x1x32xf32, #tpu.memory_space<vmem>>, %arg7: memref<16x64xf32, #tpu.memory_space<vmem>>, %arg8: memref<16x64xf32, #tpu.memory_space<vmem>>, %arg9: memref<64x64xbf16, #tpu.memory_space<vmem>>, %arg10: memref<16x16xf32, #tpu.memory_space<vmem>>, %arg11: memref<1x32x32xbf16, #tpu.memory_space<vmem>>, %arg12: memref<1x1x32xf32, #tpu.memory_space<vmem>>, %arg13: memref<1x32x32xbf16, #tpu.memory_space<vmem>>, %arg14: memref<1x1x32xf32, #tpu.memory_space<vmem>>, %arg15: memref<1x32x32xbf16, #tpu.memory_space<vmem>>, %arg16: memref<1x1x32xf32, #tpu.memory_space<vmem>>, %arg17: memref<2xf32, #tpu.memory_space<smem>>, %arg18: memref<1x16x32xf32, #tpu.memory_space<vmem>>, %arg19: memref<16x32xf32, #tpu.memory_space<vmem>>) attributes {dimension_semantics = [#tpu.dimension_semantics<parallel>, #tpu.dimension_semantics<arbitrary>], iteration_bounds = array<i64: 2, 2>, scalar_prefetch = 0 : i64, scratch_operands = 1 : i64, tpu.core_type = #tpu.core_type<tc>, window_params = [{transform_indices = @transform_0, window_bounds = array<i64: 1, 16, 32>}, {transform_indices = @transform_1, window_bounds = array<i64: 1, 16, 32>}, {transform_indices = @transform_2, window_bounds = array<i64: 1, 2, 32, 96>}, {transform_indices = @transform_3, window_bounds = array<i64: 1, 2, 32, 32>}, {transform_indices = @transform_4, window_bounds = array<i64: 1, 1, 32>}, {pipeline_mode = #tpu.pipeline_mode<synchronous>, transform_indices = @transform_5, window_bounds = array<i64: 16, 64>}, {pipeline_mode = #tpu.pipeline_mode<synchronous>, transform_indices = @transform_6, window_bounds = array<i64: 16, 64>}, {pipeline_mode = #tpu.pipeline_mode<synchronous>, transform_indices = @transform_7, window_bounds = array<i64: 64, 64>}, {pipeline_mode = #tpu.pipeline_mode<synchronous>, transform_indices = @transform_8, window_bounds = array<i64: 16, 16>}, {transform_indices = @transform_9, window_bounds = array<i64: 1, 32, 32>}, {transform_indices = @transform_10, window_bounds = array<i64: 1, 1, 32>}, {transform_indices = @transform_11, window_bounds = array<i64: 1, 32, 32>}, {transform_indices = @transform_12, window_bounds = array<i64: 1, 1, 32>}, {transform_indices = @transform_13, window_bounds = array<i64: 1, 32, 32>}, {transform_indices = @transform_14, window_bounds = array<i64: 1, 1, 32>}, {transform_indices = @transform_15, window_bounds = array<i64: 2>}, {transform_indices = @transform_16, window_bounds = array<i64: 1, 16, 32>}]} {
    %c0_i32 = arith.constant 0 : i32
    %0 = arith.cmpi eq, %arg1, %c0_i32 : i32
    %1 = arith.extui %0 : i1 to i32
    %c0_i32_0 = arith.constant 0 : i32
    %2 = arith.cmpi ne, %1, %c0_i32_0 : i32
    scf.if %2 {
      %c0_60 = arith.constant 0 : index
      %c0_61 = arith.constant 0 : index
      %c0_62 = arith.constant 0 : index
      %119 = vector.load %arg2[%c0_60, %c0_61, %c0_62] : memref<1x16x32xf32, #tpu.memory_space<vmem>>, vector<1x16x32xf32>
      %120 = vector.shape_cast %119 : vector<1x16x32xf32> to vector<16x32xf32>
      %c0_63 = arith.constant 0 : index
      %c0_64 = arith.constant 0 : index
      %121 = vector.load %arg19[%c0_63, %c0_64] : memref<16x32xf32, #tpu.memory_space<vmem>>, vector<16x32xf32>
      tpu.vector_store %arg19[%c0_63, %c0_64], %120 {strides = array<i32>} : memref<16x32xf32, #tpu.memory_space<vmem>>, vector<16x32xf32>,
    } else {
    }
    %c0 = arith.constant 0 : index
    %c0_1 = arith.constant 0 : index
    %3 = vector.load %arg19[%c0, %c0_1] : memref<16x32xf32, #tpu.memory_space<vmem>>, vector<16x32xf32>
    %c0_2 = arith.constant 0 : index
    %c0_3 = arith.constant 0 : index
    %c0_4 = arith.constant 0 : index
    %4 = vector.load %arg3[%c0_2, %c0_3, %c0_4] : memref<1x16x32xf32, #tpu.memory_space<vmem>>, vector<1x16x32xf32>
    %5 = vector.shape_cast %4 : vector<1x16x32xf32> to vector<16x32xf32>
    %6 = arith.mulf %3, %3 : vector<16x32xf32>
    %7 = vector.shape_cast %6 : vector<16x32xf32> to vector<1x16x32xf32>
    %cst = arith.constant dense<0.000000e+00> : vector<1xf32>
    %8 = vector.multi_reduction <add>, %7, %cst [1, 2] : vector<1x16x32xf32> to vector<1xf32>
    %9 = vector.shape_cast %8 : vector<1xf32> to vector<1x1x1xf32>
    %10 = vector.extract %9[0, 0, 0] : f32 from vector<1x1x1xf32>
    %cst_5 = arith.constant 5.120000e+02 : f32
    %11 = arith.divf %10, %cst_5 : f32
    %12 = math.rsqrt %11 : f32
    %13 = vector.broadcast %12 : f32 to vector<16x32xf32>
    %14 = arith.mulf %3, %13 : vector<16x32xf32>
    %15 = arith.mulf %5, %14 : vector<16x32xf32>
    %16 = arith.truncf %15 : vector<16x32xf32> to vector<16x32xbf16>
    %17 = vector.shape_cast %16 : vector<16x32xbf16> to vector<1x16x32xbf16>
    %18 = vector.broadcast %17 : vector<1x16x32xbf16> to vector<2x16x32xbf16>
    %c0_6 = arith.constant 0 : index
    %c0_7 = arith.constant 0 : index
    %c0_8 = arith.constant 0 : index
    %c0_9 = arith.constant 0 : index
    %19 = vector.load %arg4[%c0_6, %c0_7, %c0_8, %c0_9] : memref<1x2x32x96xbf16, #tpu.memory_space<vmem>>, vector<1x2x32x96xbf16>
    %20 = vector.shape_cast %19 : vector<1x2x32x96xbf16> to vector<2x32x96xbf16>
    "tpu.trace_start"() <{level = 10 : i32, message = "hsd,hde->hse"}> : () -> ()
    %cst_10 = arith.constant dense<0.000000e+00> : vector<2x16x96xf32>
    %21 = tpu.matmul %18, %20, %cst_10 {dimension_numbers = #tpu.dot_dimension_numbers<[2], [1], [1], [2], [0, 0, 0, 1, 1, 2], [0], [0]>} : vector<2x16x32xbf16>, vector<2x32x96xbf16>, vector<2x16x96xf32> -> vector<2x16x96xf32>
    "tpu.trace_stop"() : () -> ()
    %22 = vector.extract_strided_slice %21 {offsets = [0, 0, 0], sizes = [2, 16, 64], strides = [1, 1, 1]} : vector<2x16x96xf32> to vector<2x16x64xf32>
    %23 = arith.truncf %22 : vector<2x16x64xf32> to vector<2x16x64xbf16>
    %24 = vector.extract_strided_slice %21 {offsets = [0, 0, 64], sizes = [2, 16, 32], strides = [1, 1, 1]} : vector<2x16x96xf32> to vector<2x16x32xf32>
    %25 = arith.truncf %24 : vector<2x16x32xf32> to vector<2x16x32xbf16>
    %c0_11 = arith.constant 0 : index
    %c0_12 = arith.constant 0 : index
    %26 = vector.load %arg9[%c0_11, %c0_12] : memref<64x64xbf16, #tpu.memory_space<vmem>>, vector<64x64xbf16>
    %27 = vector.shape_cast %26 : vector<64x64xbf16> to vector<1x64x64xbf16>
    %28 = vector.broadcast %27 : vector<1x64x64xbf16> to vector<2x64x64xbf16>
    "tpu.trace_start"() <{level = 10 : i32, message = "hse,hef->hsf"}> : () -> ()
    %cst_13 = arith.constant dense<0.000000e+00> : vector<2x16x64xf32>
    %29 = tpu.matmul %23, %28, %cst_13 {dimension_numbers = #tpu.dot_dimension_numbers<[2], [1], [1], [2], [0, 0, 0, 1, 1, 2], [0], [0]>} : vector<2x16x64xbf16>, vector<2x64x64xbf16>, vector<2x16x64xf32> -> vector<2x16x64xf32>
    "tpu.trace_stop"() : () -> ()
    %c0_14 = arith.constant 0 : index
    %c0_15 = arith.constant 0 : index
    %30 = vector.load %arg7[%c0_14, %c0_15] : memref<16x64xf32, #tpu.memory_space<vmem>>, vector<16x64xf32>
    %31 = vector.shape_cast %30 : vector<16x64xf32> to vector<1x16x64xf32>
    %32 = arith.extf %23 : vector<2x16x64xbf16> to vector<2x16x64xf32>
    %33 = vector.broadcast %31 : vector<1x16x64xf32> to vector<2x16x64xf32>
    %34 = arith.mulf %32, %33 : vector<2x16x64xf32>
    %c0_16 = arith.constant 0 : index
    %c0_17 = arith.constant 0 : index
    %35 = vector.load %arg8[%c0_16, %c0_17] : memref<16x64xf32, #tpu.memory_space<vmem>>, vector<16x64xf32>
    %36 = vector.shape_cast %35 : vector<16x64xf32> to vector<1x16x64xf32>
    %37 = vector.broadcast %36 : vector<1x16x64xf32> to vector<2x16x64xf32>
    %38 = arith.mulf %29, %37 : vector<2x16x64xf32>
    %39 = arith.addf %34, %38 : vector<2x16x64xf32>
    %40 = arith.truncf %39 : vector<2x16x64xf32> to vector<2x16x64xbf16>
    %41 = vector.extract_strided_slice %40 {offsets = [0, 0, 0], sizes = [2, 16, 32], strides = [1, 1, 1]} : vector<2x16x64xbf16> to vector<2x16x32xbf16>
    %42 = vector.extract_strided_slice %40 {offsets = [0, 0, 32], sizes = [2, 16, 32], strides = [1, 1, 1]} : vector<2x16x64xbf16> to vector<2x16x32xbf16>
    "tpu.trace_start"() <{level = 10 : i32, message = "hsd,htd->hst"}> : () -> ()
    %cst_18 = arith.constant dense<0.000000e+00> : vector<2x16x16xf32>
    %43 = tpu.matmul %41, %42, %cst_18 {dimension_numbers = #tpu.dot_dimension_numbers<[2], [2], [1], [1], [0, 0, 0, 1, 1, 1], [0], [0]>} : vector<2x16x32xbf16>, vector<2x16x32xbf16>, vector<2x16x16xf32> -> vector<2x16x16xf32>
    "tpu.trace_stop"() : () -> ()
    %c0_19 = arith.constant 0 : index
    %c0_20 = arith.constant 0 : index
    %44 = vector.load %arg10[%c0_19, %c0_20] : memref<16x16xf32, #tpu.memory_space<vmem>>, vector<16x16xf32>
    %45 = vector.shape_cast %44 : vector<16x16xf32> to vector<1x16x16xf32>
    %46 = vector.broadcast %45 : vector<1x16x16xf32> to vector<2x16x16xf32>
    %47 = arith.addf %43, %46 : vector<2x16x16xf32>
    %cst_21 = arith.constant dense<0xFF800000> : vector<2x16xf32>
    %48 = vector.multi_reduction <maximumf>, %47, %cst_21 [2] : vector<2x16x16xf32> to vector<2x16xf32>
    %49 = vector.shape_cast %48 : vector<2x16xf32> to vector<2x16x1xf32>
    %50 = vector.broadcast %49 : vector<2x16x1xf32> to vector<2x16x16xf32>
    %51 = arith.subf %47, %50 : vector<2x16x16xf32>
    %52 = math.exp %51 : vector<2x16x16xf32>
    %cst_22 = arith.constant dense<0.000000e+00> : vector<2x16xf32>
    %53 = vector.multi_reduction <add>, %52, %cst_22 [2] : vector<2x16x16xf32> to vector<2x16xf32>
    %54 = vector.shape_cast %53 : vector<2x16xf32> to vector<2x16x1xf32>
    %55 = tpu.reciprocal %54 {approx = true} : vector<2x16x1xf32> -> vector<2x16x1xf32>
    %56 = vector.broadcast %55 : vector<2x16x1xf32> to vector<2x16x16xf32>
    %57 = arith.mulf %52, %56 : vector<2x16x16xf32>
    %58 = arith.truncf %57 : vector<2x16x16xf32> to vector<2x16x16xbf16>
    "tpu.trace_start"() <{level = 10 : i32, message = "hst,htd->hsd"}> : () -> ()
    %cst_23 = arith.constant dense<0.000000e+00> : vector<2x16x32xf32>
    %59 = tpu.matmul %58, %25, %cst_23 {dimension_numbers = #tpu.dot_dimension_numbers<[2], [1], [1], [2], [0, 0, 0, 1, 1, 2], [0], [0]>} : vector<2x16x16xbf16>, vector<2x16x32xbf16>, vector<2x16x32xf32> -> vector<2x16x32xf32>
    "tpu.trace_stop"() : () -> ()
    %60 = arith.truncf %59 : vector<2x16x32xf32> to vector<2x16x32xbf16>
    %c0_24 = arith.constant 0 : index
    %c0_25 = arith.constant 0 : index
    %c0_26 = arith.constant 0 : index
    %c0_27 = arith.constant 0 : index
    %61 = vector.load %arg5[%c0_24, %c0_25, %c0_26, %c0_27] : memref<1x2x32x32xbf16, #tpu.memory_space<vmem>>, vector<1x2x32x32xbf16>
    %62 = vector.shape_cast %61 : vector<1x2x32x32xbf16> to vector<2x32x32xbf16>
    "tpu.trace_start"() <{level = 10 : i32, message = "hsd,hdm->hsm"}> : () -> ()
    %cst_28 = arith.constant dense<0.000000e+00> : vector<2x16x32xf32>
    %63 = tpu.matmul %60, %62, %cst_28 {dimension_numbers = #tpu.dot_dimension_numbers<[2], [1], [1], [2], [0, 0, 0, 1, 1, 2], [0], [0]>} : vector<2x16x32xbf16>, vector<2x32x32xbf16>, vector<2x16x32xf32> -> vector<2x16x32xf32>
    "tpu.trace_stop"() : () -> ()
    %cst_29 = arith.constant dense<0.000000e+00> : vector<16x32xf32>
    %64 = vector.multi_reduction <add>, %63, %cst_29 [0] : vector<2x16x32xf32> to vector<16x32xf32>
    %c0_30 = arith.constant 0 : index
    %c0_31 = arith.constant 0 : index
    %c0_32 = arith.constant 0 : index
    %65 = vector.load %arg6[%c0_30, %c0_31, %c0_32] : memref<1x1x32xf32, #tpu.memory_space<vmem>>, vector<1x1x32xf32>
    %66 = vector.shape_cast %65 : vector<1x1x32xf32> to vector<1x32xf32>
    %67 = vector.broadcast %66 : vector<1x32xf32> to vector<16x32xf32>
    %68 = arith.addf %64, %67 : vector<16x32xf32>
    %69 = arith.addf %15, %68 : vector<16x32xf32>
    %70 = arith.mulf %69, %69 : vector<16x32xf32>
    %71 = vector.shape_cast %70 : vector<16x32xf32> to vector<1x16x32xf32>
    %cst_33 = arith.constant dense<0.000000e+00> : vector<1xf32>
    %72 = vector.multi_reduction <add>, %71, %cst_33 [1, 2] : vector<1x16x32xf32> to vector<1xf32>
    %73 = vector.shape_cast %72 : vector<1xf32> to vector<1x1x1xf32>
    %74 = vector.extract %73[0, 0, 0] : f32 from vector<1x1x1xf32>
    %cst_34 = arith.constant 5.120000e+02 : f32
    %75 = arith.divf %74, %cst_34 : f32
    %76 = math.rsqrt %75 : f32
    %77 = vector.broadcast %76 : f32 to vector<16x32xf32>
    %78 = arith.mulf %69, %77 : vector<16x32xf32>
    %79 = arith.mulf %5, %78 : vector<16x32xf32>
    %80 = arith.truncf %79 : vector<16x32xf32> to vector<16x32xbf16>
    %c0_35 = arith.constant 0 : index
    %c0_36 = arith.constant 0 : index
    %c0_37 = arith.constant 0 : index
    %81 = vector.load %arg11[%c0_35, %c0_36, %c0_37] : memref<1x32x32xbf16, #tpu.memory_space<vmem>>, vector<1x32x32xbf16>
    %82 = vector.shape_cast %81 : vector<1x32x32xbf16> to vector<32x32xbf16>
    %cst_38 = arith.constant dense<0.000000e+00> : vector<16x32xf32>
    %83 = tpu.matmul %80, %82, %cst_38 {dimension_numbers = #tpu.dot_dimension_numbers<[1], [0], [0], [1], [0, 0, 1, 1], [], []>} : vector<16x32xbf16>, vector<32x32xbf16>, vector<16x32xf32> -> vector<16x32xf32>
    %c0_39 = arith.constant 0 : index
    %c0_40 = arith.constant 0 : index
    %c0_41 = arith.constant 0 : index
    %84 = vector.load %arg12[%c0_39, %c0_40, %c0_41] : memref<1x1x32xf32, #tpu.memory_space<vmem>>, vector<1x1x32xf32>
    %85 = vector.shape_cast %84 : vector<1x1x32xf32> to vector<1x32xf32>
    %86 = vector.broadcast %85 : vector<1x32xf32> to vector<16x32xf32>
    %87 = arith.addf %83, %86 : vector<16x32xf32>
    %88 = arith.truncf %87 : vector<16x32xf32> to vector<16x32xbf16>
    %89 = arith.index_cast %arg1 : i32 to index
    %90 = memref.load %arg17[%89] : memref<2xf32, #tpu.memory_space<smem>>
    %c0_42 = arith.constant 0 : index
    %c0_43 = arith.constant 0 : index
    %c0_44 = arith.constant 0 : index
    %91 = vector.load %arg13[%c0_42, %c0_43, %c0_44] : memref<1x32x32xbf16, #tpu.memory_space<vmem>>, vector<1x32x32xbf16>
    %92 = vector.shape_cast %91 : vector<1x32x32xbf16> to vector<32x32xbf16>
    %cst_45 = arith.constant dense<0.000000e+00> : vector<16x32xf32>
    %93 = tpu.matmul %88, %92, %cst_45 {dimension_numbers = #tpu.dot_dimension_numbers<[1], [0], [0], [1], [0, 0, 1, 1], [], []>} : vector<16x32xbf16>, vector<32x32xbf16>, vector<16x32xf32> -> vector<16x32xf32>
    %c0_46 = arith.constant 0 : index
    %c0_47 = arith.constant 0 : index
    %c0_48 = arith.constant 0 : index
    %94 = vector.load %arg14[%c0_46, %c0_47, %c0_48] : memref<1x1x32xf32, #tpu.memory_space<vmem>>, vector<1x1x32xf32>
    %95 = vector.shape_cast %94 : vector<1x1x32xf32> to vector<1x32xf32>
    %96 = vector.broadcast %95 : vector<1x32xf32> to vector<16x32xf32>
    %97 = arith.addf %93, %96 : vector<16x32xf32>
    %c0_49 = arith.constant 0 : index
    %c0_50 = arith.constant 0 : index
    %c0_51 = arith.constant 0 : index
    %98 = vector.load %arg15[%c0_49, %c0_50, %c0_51] : memref<1x32x32xbf16, #tpu.memory_space<vmem>>, vector<1x32x32xbf16>
    %99 = vector.shape_cast %98 : vector<1x32x32xbf16> to vector<32x32xbf16>
    %cst_52 = arith.constant dense<0.000000e+00> : vector<16x32xf32>
    %100 = tpu.matmul %88, %99, %cst_52 {dimension_numbers = #tpu.dot_dimension_numbers<[1], [0], [0], [1], [0, 0, 1, 1], [], []>} : vector<16x32xbf16>, vector<32x32xbf16>, vector<16x32xf32> -> vector<16x32xf32>
    %c0_53 = arith.constant 0 : index
    %c0_54 = arith.constant 0 : index
    %c0_55 = arith.constant 0 : index
    %101 = vector.load %arg16[%c0_53, %c0_54, %c0_55] : memref<1x1x32xf32, #tpu.memory_space<vmem>>, vector<1x1x32xf32>
    %102 = vector.shape_cast %101 : vector<1x1x32xf32> to vector<1x32xf32>
    %103 = vector.broadcast %102 : vector<1x32xf32> to vector<16x32xf32>
    %104 = arith.addf %100, %103 : vector<16x32xf32>
    %105 = vector.broadcast %90 : f32 to vector<16x32xf32>
    %106 = arith.mulf %105, %97 : vector<16x32xf32>
    %107 = arith.negf %106 : vector<16x32xf32>
    %108 = math.exp %107 : vector<16x32xf32>
    %cst_56 = arith.constant 1.000000e+00 : f32
    %109 = vector.broadcast %cst_56 : f32 to vector<16x32xf32>
    %110 = arith.addf %109, %108 : vector<16x32xf32>
    %111 = arith.divf %109, %110 : vector<16x32xf32>
    %112 = arith.mulf %97, %111 : vector<16x32xf32>
    %113 = arith.mulf %112, %104 : vector<16x32xf32>
    %114 = arith.addf %79, %113 : vector<16x32xf32>
    %c0_57 = arith.constant 0 : index
    %c0_58 = arith.constant 0 : index
    %115 = vector.load %arg19[%c0_57, %c0_58] : memref<16x32xf32, #tpu.memory_space<vmem>>, vector<16x32xf32>
    tpu.vector_store %arg19[%c0_57, %c0_58], %114 {strides = array<i32>} : memref<16x32xf32, #tpu.memory_space<vmem>>, vector<16x32xf32>,
    %c1_i32 = arith.constant 1 : i32
    %116 = arith.cmpi eq, %arg1, %c1_i32 : i32
    %117 = arith.extui %116 : i1 to i32
    %c0_i32_59 = arith.constant 0 : i32
    %118 = arith.cmpi ne, %117, %c0_i32_59 : i32
    scf.if %118 {
      %c0_60 = arith.constant 0 : index
      %c0_61 = arith.constant 0 : index
      %c0_62 = arith.constant 0 : index
      %119 = vector.load %arg18[%c0_60, %c0_61, %c0_62] : memref<1x16x32xf32, #tpu.memory_space<vmem>>, vector<1x16x32xf32>
      %120 = vector.shape_cast %119 : vector<1x16x32xf32> to vector<16x32xf32>
      %121 = vector.shape_cast %114 : vector<16x32xf32> to vector<1x16x32xf32>
      tpu.vector_store %arg18[%c0_60, %c0_61, %c0_62], %121 {strides = array<i32>} : memref<1x16x32xf32, #tpu.memory_space<vmem>>, vector<1x16x32xf32>,
    } else {
    }
    return
  }
  func.func @transform_0(%arg0: i32, %arg1: i32) -> (i32, i32, i32) {
    %c0_i32 = arith.constant 0 : i32
    %c0_i32_0 = arith.constant 0 : i32
    %c0_i32_1 = arith.constant 0 : i32
    return %arg0, %c0_i32, %c0_i32_0 : i32, i32, i32
  }
  func.func @transform_1(%arg0: i32, %arg1: i32) -> (i32, i32, i32) {
    %c0_i32 = arith.constant 0 : i32
    %c0_i32_0 = arith.constant 0 : i32
    %c0_i32_1 = arith.constant 0 : i32
    return %arg1, %c0_i32, %c0_i32_0 : i32, i32, i32
  }
  func.func @transform_2(%arg0: i32, %arg1: i32) -> (i32, i32, i32, i32) {
    %c0_i32 = arith.constant 0 : i32
    %c0_i32_0 = arith.constant 0 : i32
    %c0_i32_1 = arith.constant 0 : i32
    %c0_i32_2 = arith.constant 0 : i32
    return %arg1, %c0_i32, %c0_i32_0, %c0_i32_1 : i32, i32, i32, i32
  }
  func.func @transform_3(%arg0: i32, %arg1: i32) -> (i32, i32, i32, i32) {
    %c0_i32 = arith.constant 0 : i32
    %c0_i32_0 = arith.constant 0 : i32
    %c0_i32_1 = arith.constant 0 : i32
    %c0_i32_2 = arith.constant 0 : i32
    return %arg1, %c0_i32, %c0_i32_0, %c0_i32_1 : i32, i32, i32, i32
  }
  func.func @transform_4(%arg0: i32, %arg1: i32) -> (i32, i32, i32) {
    %c0_i32 = arith.constant 0 : i32
    %c0_i32_0 = arith.constant 0 : i32
    %c0_i32_1 = arith.constant 0 : i32
    return %arg1, %c0_i32, %c0_i32_0 : i32, i32, i32
  }
  func.func @transform_5(%arg0: i32, %arg1: i32) -> (i32, i32) {
    %c0_i32 = arith.constant 0 : i32
    %c0_i32_0 = arith.constant 0 : i32
    %c0_i32_1 = arith.constant 0 : i32
    return %c0_i32, %c0_i32_0 : i32, i32
  }
  func.func @transform_6(%arg0: i32, %arg1: i32) -> (i32, i32) {
    %c0_i32 = arith.constant 0 : i32
    %c0_i32_0 = arith.constant 0 : i32
    %c0_i32_1 = arith.constant 0 : i32
    return %c0_i32, %c0_i32_0 : i32, i32
  }
  func.func @transform_7(%arg0: i32, %arg1: i32) -> (i32, i32) {
    %c0_i32 = arith.constant 0 : i32
    %c0_i32_0 = arith.constant 0 : i32
    %c0_i32_1 = arith.constant 0 : i32
    return %c0_i32, %c0_i32_0 : i32, i32
  }
  func.func @transform_8(%arg0: i32, %arg1: i32) -> (i32, i32) {
    %c0_i32 = arith.constant 0 : i32
    %c0_i32_0 = arith.constant 0 : i32
    %c0_i32_1 = arith.constant 0 : i32
    return %c0_i32, %c0_i32_0 : i32, i32
  }
  func.func @transform_9(%arg0: i32, %arg1: i32) -> (i32, i32, i32) {
    %c0_i32 = arith.constant 0 : i32
    %c0_i32_0 = arith.constant 0 : i32
    %c0_i32_1 = arith.constant 0 : i32
    return %arg1, %c0_i32, %c0_i32_0 : i32, i32, i32
  }
  func.func @transform_10(%arg0: i32, %arg1: i32) -> (i32, i32, i32) {
    %c0_i32 = arith.constant 0 : i32
    %c0_i32_0 = arith.constant 0 : i32
    %c0_i32_1 = arith.constant 0 : i32
    return %arg1, %c0_i32, %c0_i32_0 : i32, i32, i32
  }
  func.func @transform_11(%arg0: i32, %arg1: i32) -> (i32, i32, i32) {
    %c0_i32 = arith.constant 0 : i32
    %c0_i32_0 = arith.constant 0 : i32
    %c0_i32_1 = arith.constant 0 : i32
    return %arg1, %c0_i32, %c0_i32_0 : i32, i32, i32
  }
  func.func @transform_12(%arg0: i32, %arg1: i32) -> (i32, i32, i32) {
    %c0_i32 = arith.constant 0 : i32
    %c0_i32_0 = arith.constant 0 : i32
    %c0_i32_1 = arith.constant 0 : i32
    return %arg1, %c0_i32, %c0_i32_0 : i32, i32, i32
  }
  func.func @transform_13(%arg0: i32, %arg1: i32) -> (i32, i32, i32) {
    %c0_i32 = arith.constant 0 : i32
    %c0_i32_0 = arith.constant 0 : i32
    %c0_i32_1 = arith.constant 0 : i32
    return %arg1, %c0_i32, %c0_i32_0 : i32, i32, i32
  }
  func.func @transform_14(%arg0: i32, %arg1: i32) -> (i32, i32, i32) {
    %c0_i32 = arith.constant 0 : i32
    %c0_i32_0 = arith.constant 0 : i32
    %c0_i32_1 = arith.constant 0 : i32
    return %arg1, %c0_i32, %c0_i32_0 : i32, i32, i32
  }
  func.func @transform_15(%arg0: i32, %arg1: i32) -> i32 {
    %c0_i32 = arith.constant 0 : i32
    %c0_i32_0 = arith.constant 0 : i32
    return %c0_i32 : i32
  }
  func.func @transform_16(%arg0: i32, %arg1: i32) -> (i32, i32, i32) {
    %c0_i32 = arith.constant 0 : i32
    %c0_i32_0 = arith.constant 0 : i32
    %c0_i32_1 = arith.constant 0 : i32
    return %arg0, %c0_i32, %c0_i32_0 : i32, i32, i32
  }
}

</mosaic_0001>

<llo_original>
// kernel: llama_forward.3
$region0: #{llama_forward.3}
  #allocation0 [shape = 'u32[]', space=smem, size = 0x4, offset = 0x4, fixed_abs, tag = 'smem constant byte address 0x4 - core index']
  #allocation1 [shape = 'u32[144,128]{1,0:T(1,128)}', space=vmem, size = 0x12000, scoped, tag = 'internal scratch']
  #allocation2 [shape = 'f32[1]{0:T(128)S(6)}', space=smem, size = 0x200, scoped, tag = 'scoped memory for llama_forward.3']
  %s0 = inlined_call_operand.vmem [shape: f32[2,16,32], index: 0, kind: input, shape index: {}]
  %s1 = inlined_call_operand.vmem [shape: bf16[32,32], index: 1, kind: input, shape index: {}]
  %s2 = inlined_call_operand.vmem [shape: f32[1,32], index: 2, kind: input, shape index: {}]
  %s3 = inlined_call_operand.vmem [shape: bf16[32,32], index: 3, kind: input, shape index: {}]
  %s4 = inlined_call_operand.vmem [shape: f32[1,32], index: 4, kind: input, shape index: {}]
  %s5 = inlined_call_operand.vmem [shape: bf16[32,32], index: 5, kind: input, shape index: {}]
  %s6 = inlined_call_operand.vmem [shape: f32[1,32], index: 6, kind: input, shape index: {}]
  %s7 = inlined_call_operand.<no memory space> [shape: f32[1], index: 7, kind: input, shape index: {}]
  %s8 = inlined_call_operand.vmem [shape: bf16[32,64], index: 8, kind: input, shape index: {}]
  %s9 = inlined_call_operand.vmem [shape: f32[1,64], index: 9, kind: input, shape index: {}]
  %s10 = inlined_call_operand.hbm [shape: f32[2,16,64], index: 10, kind: output, shape index: {}]
  %s11 = sld [smem:[#allocation0]]
  $region73: #{llama_forward.3} parent=0
    _
  %s13 = ssub.s32 1, %s11
  %s14 = scalar_select 0, %s13, %s11
  %15 = sst [smem:[#allocation2]] %s7
  $region1: #{llama_forward.3} parent=0
    #allocation3 [shape = 'u8[16384]{0}', space=vmem, size = 0x4000, scoped, tag = 'output window, operand 0']
    #allocation4 [shape = 's32[2]{0}', space=sflag, size = 0x8, scoped, tag = 'scoped memory for llama_forward.3']
    %16 = vsyncpa [#allocation4], 0
    %s17 = scalar_lea.sflag [#allocation4], 1
    %18 = vsyncpa %s17, 0
    loop: start=0, step=1, limit=4
    $region2: #{llama_forward.3} parent=1 // loop_pre_header
      _
    $region3: #{llama_forward.3} parent=1 // loop_header
      %s20 = sphi 0, %s24
      %p21 = scmp.ge.s32.totalorder %s20, 4
      %s30 = sphi 0, %s32
      %s33 = sphi 0, %s30
      %s34 = sphi 0, %s33
      %s50 = sphi 0, %s34
      %s54 = sphi 0, %s54
      %s56 = sphi 0, %s54
      %s57 = sphi 0, %s56
      %s71 = sphi 0, %s57
      %s75 = sphi 0, %s75
      %s77 = sphi 0, %s75
      %s78 = sphi 0, %s77
      %s92 = sphi 0, %s78
      %s96 = sphi 0, %s96
      %s98 = sphi 0, %s96
      %s99 = sphi 0, %s98
      %s113 = sphi 0, %s99
      %s117 = sphi 0, %s117
      %s119 = sphi 0, %s117
      %s120 = sphi 0, %s119
      %s134 = sphi 0, %s120
      %s138 = sphi 0, %s138
      %s140 = sphi 0, %s138
      %s141 = sphi 0, %s140
      %s155 = sphi 0, %s141
      %s159 = sphi 0, %s159
      %s161 = sphi 0, %s159
      %s162 = sphi 0, %s161
      %s176 = sphi 0, %s162
      %s180 = sphi 0, %s180
      %s182 = sphi 0, %s180
      %s183 = sphi 0, %s182
      %s197 = sphi 0, %s183
      %s201 = sphi 0, %s201
      %s203 = sphi 0, %s201
      %s204 = sphi 0, %s203
      %s218 = sphi 0, %s204
      %s222 = sphi 0, %s222
      %s224 = sphi 0, %s222
      %s225 = sphi 0, %s224
      %s239 = sphi 0, %s225
      %s245 = sphi 0, %s247
      %s248 = sphi 0, %s245
      %s249 = sphi 0, %s248
      %s265 = sphi 0, %s249
    $region4: #{llama_forward.3} parent=1 // loop_header_branch
      %23 = sbr.rel (%p21) target = $region8
    $region5: #{llama_forward.3} parent=1 // loop_body
      %s25 = ssub.s32 %s20, 1
      %s26 = ssub.s32 %s20, 2
      %s27 = sadd.s32 %s20, 1
      %s28 = ssub.s32 %s20, %s27
      %p29 = scmp.eq.s32.totalorder %s28, 0
      %s31 = sadd.s32 %s30, 1
      %s32 = scalar_select %p29, %s30, %s31
      %p35 = pneg %p29
      %p36 = scmp.eq.s32.totalorder %s20, 1
      %p37 = por %p35, %p36
      %p38 = scmp.ne.s32.totalorder %s30, %s33
      %p39 = scmp.eq.s32.totalorder %s20, 0
      %p40 = por %p38, %p39
      %p41 = scmp.ne.s32.totalorder %s30, %s33
      %p42 = scmp.eq.s32.totalorder %s25, 1
      %p43 = por %p41, %p42
      %p44 = scmp.ne.s32.totalorder %s33, %s34
      %p45 = scmp.eq.s32.totalorder %s25, 0
      %p46 = por %p44, %p45
      %p47 = scmp.ne.s32.totalorder %s33, %s34
      %p48 = scmp.eq.s32.totalorder %s26, 1
      %p49 = por %p47, %p48
      %p51 = scmp.ne.s32.totalorder %s34, %s50
      %p52 = scmp.eq.s32.totalorder %s26, 0
      %p53 = por %p51, %p52
      %s55 = sadd.s32 %s54, 1
      %p58 = scmp.eq.s32.totalorder %s20, 1
      %p59 = scmp.ne.s32.totalorder %s54, %s56
      %p60 = scmp.eq.s32.totalorder %s20, 0
      %p61 = por %p59, %p60
      %p62 = scmp.ne.s32.totalorder %s54, %s56
      %p63 = scmp.eq.s32.totalorder %s25, 1
      %p64 = por %p62, %p63
      %p65 = scmp.ne.s32.totalorder %s56, %s57
      %p66 = scmp.eq.s32.totalorder %s25, 0
      %p67 = por %p65, %p66
      %p68 = scmp.ne.s32.totalorder %s56, %s57
      %p69 = scmp.eq.s32.totalorder %s26, 1
      %p70 = por %p68, %p69
      %p72 = scmp.ne.s32.totalorder %s57, %s71
      %p73 = scmp.eq.s32.totalorder %s26, 0
      %p74 = por %p72, %p73
      %s76 = sadd.s32 %s75, 1
      %p79 = scmp.eq.s32.totalorder %s20, 1
      %p80 = scmp.ne.s32.totalorder %s75, %s77
      %p81 = scmp.eq.s32.totalorder %s20, 0
      %p82 = por %p80, %p81
      %p83 = scmp.ne.s32.totalorder %s75, %s77
      %p84 = scmp.eq.s32.totalorder %s25, 1
      %p85 = por %p83, %p84
      %p86 = scmp.ne.s32.totalorder %s77, %s78
      %p87 = scmp.eq.s32.totalorder %s25, 0
      %p88 = por %p86, %p87
      %p89 = scmp.ne.s32.totalorder %s77, %s78
      %p90 = scmp.eq.s32.totalorder %s26, 1
      %p91 = por %p89, %p90
      %p93 = scmp.ne.s32.totalorder %s78, %s92
      %p94 = scmp.eq.s32.totalorder %s26, 0
      %p95 = por %p93, %p94
      %s97 = sadd.s32 %s96, 1
      %p100 = scmp.eq.s32.totalorder %s20, 1
      %p101 = scmp.ne.s32.totalorder %s96, %s98
      %p102 = scmp.eq.s32.totalorder %s20, 0
      %p103 = por %p101, %p102
      %p104 = scmp.ne.s32.totalorder %s96, %s98
      %p105 = scmp.eq.s32.totalorder %s25, 1
      %p106 = por %p104, %p105
      %p107 = scmp.ne.s32.totalorder %s98, %s99
      %p108 = scmp.eq.s32.totalorder %s25, 0
      %p109 = por %p107, %p108
      %p110 = scmp.ne.s32.totalorder %s98, %s99
      %p111 = scmp.eq.s32.totalorder %s26, 1
      %p112 = por %p110, %p111
      %p114 = scmp.ne.s32.totalorder %s99, %s113
      %p115 = scmp.eq.s32.totalorder %s26, 0
      %p116 = por %p114, %p115
      %s118 = sadd.s32 %s117, 1
      %p121 = scmp.eq.s32.totalorder %s20, 1
      %p122 = scmp.ne.s32.totalorder %s117, %s119
      %p123 = scmp.eq.s32.totalorder %s20, 0
      %p124 = por %p122, %p123
      %p125 = scmp.ne.s32.totalorder %s117, %s119
      %p126 = scmp.eq.s32.totalorder %s25, 1
      %p127 = por %p125, %p126
      %p128 = scmp.ne.s32.totalorder %s119, %s120
      %p129 = scmp.eq.s32.totalorder %s25, 0
      %p130 = por %p128, %p129
      %p131 = scmp.ne.s32.totalorder %s119, %s120
      %p132 = scmp.eq.s32.totalorder %s26, 1
      %p133 = por %p131, %p132
      %p135 = scmp.ne.s32.totalorder %s120, %s134
      %p136 = scmp.eq.s32.totalorder %s26, 0
      %p137 = por %p135, %p136
      %s139 = sadd.s32 %s138, 1
      %p142 = scmp.eq.s32.totalorder %s20, 1
      %p143 = scmp.ne.s32.totalorder %s138, %s140
      %p144 = scmp.eq.s32.totalorder %s20, 0
      %p145 = por %p143, %p144
      %p146 = scmp.ne.s32.totalorder %s138, %s140
      %p147 = scmp.eq.s32.totalorder %s25, 1
      %p148 = por %p146, %p147
      %p149 = scmp.ne.s32.totalorder %s140, %s141
      %p150 = scmp.eq.s32.totalorder %s25, 0
      %p151 = por %p149, %p150
      %p152 = scmp.ne.s32.totalorder %s140, %s141
      %p153 = scmp.eq.s32.totalorder %s26, 1
      %p154 = por %p152, %p153
      %p156 = scmp.ne.s32.totalorder %s141, %s155
      %p157 = scmp.eq.s32.totalorder %s26, 0
      %p158 = por %p156, %p157
      %s160 = sadd.s32 %s159, 1
      %p163 = scmp.eq.s32.totalorder %s20, 1
      %p164 = scmp.ne.s32.totalorder %s159, %s161
      %p165 = scmp.eq.s32.totalorder %s20, 0
      %p166 = por %p164, %p165
      %p167 = scmp.ne.s32.totalorder %s159, %s161
      %p168 = scmp.eq.s32.totalorder %s25, 1
      %p169 = por %p167, %p168
      %p170 = scmp.ne.s32.totalorder %s161, %s162
      %p171 = scmp.eq.s32.totalorder %s25, 0
      %p172 = por %p170, %p171
      %p173 = scmp.ne.s32.totalorder %s161, %s162
      %p174 = scmp.eq.s32.totalorder %s26, 1
      %p175 = por %p173, %p174
      %p177 = scmp.ne.s32.totalorder %s162, %s176
      %p178 = scmp.eq.s32.totalorder %s26, 0
      %p179 = por %p177, %p178
      %s181 = sadd.s32 %s180, 1
      %p184 = scmp.eq.s32.totalorder %s20, 1
      %p185 = scmp.ne.s32.totalorder %s180, %s182
      %p186 = scmp.eq.s32.totalorder %s20, 0
      %p187 = por %p185, %p186
      %p188 = scmp.ne.s32.totalorder %s180, %s182
      %p189 = scmp.eq.s32.totalorder %s25, 1
      %p190 = por %p188, %p189
      %p191 = scmp.ne.s32.totalorder %s182, %s183
      %p192 = scmp.eq.s32.totalorder %s25, 0
      %p193 = por %p191, %p192
      %p194 = scmp.ne.s32.totalorder %s182, %s183
      %p195 = scmp.eq.s32.totalorder %s26, 1
      %p196 = por %p194, %p195
      %p198 = scmp.ne.s32.totalorder %s183, %s197
      %p199 = scmp.eq.s32.totalorder %s26, 0
      %p200 = por %p198, %p199
      %s202 = sadd.s32 %s201, 1
      %p205 = scmp.eq.s32.totalorder %s20, 1
      %p206 = scmp.ne.s32.totalorder %s201, %s203
      %p207 = scmp.eq.s32.totalorder %s20, 0
      %p208 = por %p206, %p207
      %p209 = scmp.ne.s32.totalorder %s201, %s203
      %p210 = scmp.eq.s32.totalorder %s25, 1
      %p211 = por %p209, %p210
      %p212 = scmp.ne.s32.totalorder %s203, %s204
      %p213 = scmp.eq.s32.totalorder %s25, 0
      %p214 = por %p212, %p213
      %p215 = scmp.ne.s32.totalorder %s203, %s204
      %p216 = scmp.eq.s32.totalorder %s26, 1
      %p217 = por %p215, %p216
      %p219 = scmp.ne.s32.totalorder %s204, %s218
      %p220 = scmp.eq.s32.totalorder %s26, 0
      %p221 = por %p219, %p220
      %s223 = sadd.s32 %s222, 1
      %p226 = scmp.eq.s32.totalorder %s20, 1
      %p227 = scmp.ne.s32.totalorder %s222, %s224
      %p228 = scmp.eq.s32.totalorder %s20, 0
      %p229 = por %p227, %p228
      %p230 = scmp.ne.s32.totalorder %s222, %s224
      %p231 = scmp.eq.s32.totalorder %s25, 1
      %p232 = por %p230, %p231
      %p233 = scmp.ne.s32.totalorder %s224, %s225
      %p234 = scmp.eq.s32.totalorder %s25, 0
      %p235 = por %p233, %p234
      %p236 = scmp.ne.s32.totalorder %s224, %s225
      %p237 = scmp.eq.s32.totalorder %s26, 1
      %p238 = por %p236, %p237
      %p240 = scmp.ne.s32.totalorder %s225, %s239
      %p241 = scmp.eq.s32.totalorder %s26, 0
      %p242 = por %p240, %p241
      %s243 = ssub.s32 %s20, %s27
      %p244 = scmp.eq.s32.totalorder %s243, 0
      %s246 = sadd.s32 %s245, 1
      %s247 = scalar_select %p244, %s245, %s246
      %p250 = pneg %p244
      %p251 = scmp.eq.s32.totalorder %s20, 1
      %p252 = por %p250, %p251
      %p253 = scmp.ne.s32.totalorder %s245, %s248
      %p254 = scmp.eq.s32.totalorder %s20, 0
      %p255 = por %p253, %p254
      %p256 = scmp.ne.s32.totalorder %s245, %s248
      %p257 = scmp.eq.s32.totalorder %s25, 1
      %p258 = por %p256, %p257
      %p259 = scmp.ne.s32.totalorder %s248, %s249
      %p260 = scmp.eq.s32.totalorder %s25, 0
      %p261 = por %p259, %p260
      %p262 = scmp.ne.s32.totalorder %s248, %s249
      %p263 = scmp.eq.s32.totalorder %s26, 1
      %p264 = por %p262, %p263
      %p266 = scmp.ne.s32.totalorder %s249, %s265
      %p267 = scmp.eq.s32.totalorder %s26, 0
      %p268 = por %p266, %p267
      %p269 = scmp.le.s32.totalorder 1, %s20
      %p270 = scmp.lt.s32.totalorder %s20, 3
      %p271 = pnand %p269, %p270
      %p272 = pneg %p271
      // Predicated region
      $region9: #{llama_forward.3} parent=5 // pred_check
        _
      $region10: #{llama_forward.3} parent=5 // pred_check_branch
        %274 = sbr.rel (%p271) target = $region12
      $region11: #{llama_forward.3} parent=5 // pred_region
        %s275 = ssub.s32 %s20, 1
        // Predicated region
        $region13: #{llama_forward.3} parent=11 // pred_check
          %p276 = pneg %p67
        $region14: #{llama_forward.3} parent=11 // pred_check_branch
          %278 = sbr.rel (%p276) target = $region16
        $region15: #{llama_forward.3} parent=11 // pred_region
          _
        $region16: #{llama_forward.3} parent=11 // pred_fallthru
          _
        // Predicated region
        $region17: #{llama_forward.3} parent=11 // pred_check
          %p279 = pneg %p88
        $region18: #{llama_forward.3} parent=11 // pred_check_branch
          %281 = sbr.rel (%p279) target = $region20
        $region19: #{llama_forward.3} parent=11 // pred_region
          _
        $region20: #{llama_forward.3} parent=11 // pred_fallthru
          _
        // Predicated region
        $region21: #{llama_forward.3} parent=11 // pred_check
          %p282 = pneg %p109
        $region22: #{llama_forward.3} parent=11 // pred_check_branch
          %284 = sbr.rel (%p282) target = $region24
        $region23: #{llama_forward.3} parent=11 // pred_region
          _
        $region24: #{llama_forward.3} parent=11 // pred_fallthru
          _
        // Predicated region
        $region25: #{llama_forward.3} parent=11 // pred_check
          %p285 = pneg %p130
        $region26: #{llama_forward.3} parent=11 // pred_check_branch
          %287 = sbr.rel (%p285) target = $region28
        $region27: #{llama_forward.3} parent=11 // pred_region
          _
        $region28: #{llama_forward.3} parent=11 // pred_fallthru
          _
        // Predicated region
        $region29: #{llama_forward.3} parent=11 // pred_check
          %p288 = pneg %p151
        $region30: #{llama_forward.3} parent=11 // pred_check_branch
          %290 = sbr.rel (%p288) target = $region32
        $region31: #{llama_forward.3} parent=11 // pred_region
          _
        $region32: #{llama_forward.3} parent=11 // pred_fallthru
          _
        // Predicated region
        $region33: #{llama_forward.3} parent=11 // pred_check
          %p291 = pneg %p172
        $region34: #{llama_forward.3} parent=11 // pred_check_branch
          %293 = sbr.rel (%p291) target = $region36
        $region35: #{llama_forward.3} parent=11 // pred_region
          _
        $region36: #{llama_forward.3} parent=11 // pred_fallthru
          _
        // Predicated region
        $region37: #{llama_forward.3} parent=11 // pred_check
          %p294 = pneg %p193
        $region38: #{llama_forward.3} parent=11 // pred_check_branch
          %296 = sbr.rel (%p294) target = $region40
        $region39: #{llama_forward.3} parent=11 // pred_region
          _
        $region40: #{llama_forward.3} parent=11 // pred_fallthru
          _
        // Predicated region
        $region41: #{llama_forward.3} parent=11 // pred_check
          %p297 = pneg %p214
        $region42: #{llama_forward.3} parent=11 // pred_check_branch
          %299 = sbr.rel (%p297) target = $region44
        $region43: #{llama_forward.3} parent=11 // pred_region
          _
        $region44: #{llama_forward.3} parent=11 // pred_fallthru
          _
        // Predicated region
        $region45: #{llama_forward.3} parent=11 // pred_check
          %p300 = pneg %p235
        $region46: #{llama_forward.3} parent=11 // pred_check_branch
          %302 = sbr.rel (%p300) target = $region48
        $region47: #{llama_forward.3} parent=11 // pred_region
          _
        $region48: #{llama_forward.3} parent=11 // pred_fallthru
          _
      $region12: #{llama_forward.3} parent=5 // pred_fallthru
        _
      %p303 = scmp.lt.s32.totalorder %s20, 2
      // Predicated region
      $region49: #{llama_forward.3} parent=5 // pred_check
        %p304 = pneg %p303
      $region50: #{llama_forward.3} parent=5 // pred_check_branch
        %306 = sbr.rel (%p304) target = $region52
      $region51: #{llama_forward.3} parent=5 // pred_region
        // Predicated region
        $region53: #{llama_forward.3} parent=51 // pred_check
          %p307 = pneg %p40
        $region54: #{llama_forward.3} parent=51 // pred_check_branch
          %309 = sbr.rel (%p307) target = $region56
        $region55: #{llama_forward.3} parent=51 // pred_region
          %p310 = scmp.lt.s32.totalorder %s20, 1
          %s311 = scalar_select %p310, %s20, 1
          %s312 = smul.addr %s311, 2
          %s313 = smul.addr %s312, 8
          %s314 = scalar_lea.vmem %s0, %s313
        $region56: #{llama_forward.3} parent=51 // pred_fallthru
          _
      $region52: #{llama_forward.3} parent=5 // pred_fallthru
        _
      %p315 = scmp.le.s32.totalorder 1, %s20
      %p316 = scmp.lt.s32.totalorder %s20, 3
      %p317 = pnand %p315, %p316
      %p318 = pneg %p317
      // Predicated region
      $region57: #{llama_forward.3} parent=5 // pred_check
        _
      $region58: #{llama_forward.3} parent=5 // pred_check_branch
        %320 = sbr.rel (%p317) target = $region60
      $region59: #{llama_forward.3} parent=5 // pred_region
        %s321 = ssub.s32 %s20, 1
        %p322 = scmp.lt.s32.totalorder %s25, 1
        %s323 = scalar_select %p322, %s25, 1
        %s324 = smul.addr %s323, 2
        %s325 = smul.addr %s324, 8
        %s326 = scalar_lea.vmem %s0, %s325
        %p327 = pneg %p46
        %p328 = pneg %p43
        %p329 = pneg %p67
        %p330 = pneg %p64
        %p331 = pneg %p88
        %p332 = pneg %p85
        %p333 = pneg %p109
        %p334 = pneg %p106
        %p335 = pneg %p130
        %p336 = pneg %p127
        %p337 = pneg %p151
        %p338 = pneg %p148
        %p339 = pneg %p172
        %p340 = pneg %p169
        %p341 = pneg %p193
        %p342 = pneg %p190
        %p343 = pneg %p214
        %p344 = pneg %p211
        %p345 = pneg %p235
        %p346 = pneg %p232
        %p347 = pneg %p261
        %p348 = pneg %p258
        %s349 = sand.u32 %s248, 1
        %s350 = scalar_lea.sflag [#allocation4], %s349
        %s351 = sand.u32 %s248, 1
        %s352 = smul.addr %s351, 16
        %s353 = scalar_lea.vmem [#allocation3], %s352
        %p354 = scmp.lt.s32.totalorder %s25, 1
        %s355 = scalar_select %p354, %s25, 1
        %s356 = smul.addr %s355, 2
        %s357 = smul.addr %s356, 8
        %s358 = scalar_lea.vmem %s0, %s357
        %v360 = vld [vmem:[%s358] sm:$0xff]
        %v361 = vld [vmem:[%s358 + $0x8] sm:$0xff]
        %v362 = vpack.c.bf16 %v361, %v360
        %v363 = vld [vmem:[%s1] sm:$0xf]
        %v364 = vld [vmem:[%s1 + $0x4] sm:$0xf]
        %v365 = vld [vmem:[%s1 + $0x8] sm:$0xf]
        %v366 = vld [vmem:[%s1 + $0xc] sm:$0xf]
        %v367 = vld [vmem:[%s2] sm:$0x1]
        %v369 = vlaneseq
        %v370 = vshrl.u32 %v369, 7
        %v371 = vsub.s32 0, %v370
        %v372 = vrot.slane %v367, %v371
        %v378 = vunpack.c.l.b16 %v363
        %v379 = vunpack.c.l.b16 %v364
        %v380 = vunpack.c.l.b16 %v365
        %v381 = vunpack.c.l.b16 %v366
        %v382 = vpack.c.b16 %v379, %v378
        %v383 = vpack.c.b16 %v381, %v380
        %vm386 = vcmask 261120
        %v388 = vsel %vm386, %v362, 0
        %390 = vmatprep.subr.bf16.mxu0 0
        %391 = vmatpush1.bf16.msra.mxu0 %v382
        %392 = vmatprep.subr.bf16.mxu0 0
        %393 = vmatpush1.bf16.msra.mxu0 %v383
        %394 = vmatprep.subr.bf16.mxu0 0
        %395 = vmatpush1.bf16.msra.mxu0 0
        %396 = vmatprep.subr.bf16.mxu0 0
        %397 = vmatpush1.bf16.msra.mxu0 0
        %398 = vmatprep.subr.bf16.mxu0 0
        %399 = vmatpush1.bf16.msra.mxu0 0
        %400 = vmatprep.subr.bf16.mxu0 0
        %401 = vmatpush1.bf16.msra.mxu0 0
        %402 = vmatprep.subr.bf16.mxu0 0
        %403 = vmatpush1.bf16.msra.mxu0 0
        %404 = vmatprep.subr.bf16.mxu0 0
        %405 = vmatpush1.bf16.msra.mxu0 0
        %406 = vmatprep.subr.bf16.mxu0 0
        %407 = vmatpush1.bf16.msra.mxu0 0
        %408 = vmatprep.subr.bf16.mxu0 0
        %409 = vmatpush1.bf16.msra.mxu0 0
        %410 = vmatprep.subr.bf16.mxu0 0
        %411 = vmatpush1.bf16.msra.mxu0 0
        %412 = vmatprep.subr.bf16.mxu0 0
        %413 = vmatpush1.bf16.msra.mxu0 0
        %414 = vmatprep.subr.bf16.mxu0 0
        %415 = vmatpush1.bf16.msra.mxu0 0
        %416 = vmatprep.subr.bf16.mxu0 0
        %417 = vmatpush1.bf16.msra.mxu0 0
        %418 = vmatprep.subr.bf16.mxu0 0
        %419 = vmatpush1.bf16.msra.mxu0 0
        %420 = vmatprep.subr.bf16.mxu0 0
        %421 = vmatpush1.bf16.msra.mxu0 0
        %422 = vmatprep.mubr.bf16.mxu0 0
        %423 = vmatmul.mubr.bf16.gmra.mrb[0].mxu0 %v388
        %v424 = vpop.f32.mrb[0].mxu0
        %v425 = vadd.f32 %v372, %v424
        %v426 = vpop.f32.mrb[0].mxu0
        %v427 = vpop.f32.mrb[0].mxu0
        %v428 = vadd.f32 %v372, %v427
        %v429 = vpop.f32.mrb[0].mxu0
        %430 = vdwg.mxu0
        %v431 = vpack.c.bf16 %v428, %v425
        %s432 = sld [smem:[#allocation2]]
        %v433 = vld [vmem:[%s3] sm:$0xf]
        %v434 = vld [vmem:[%s3 + $0x4] sm:$0xf]
        %v435 = vld [vmem:[%s3 + $0x8] sm:$0xf]
        %v436 = vld [vmem:[%s3 + $0xc] sm:$0xf]
        %v437 = vld [vmem:[%s4] sm:$0x1]
        %v439 = vlaneseq
        %v440 = vshrl.u32 %v439, 7
        %v441 = vsub.s32 0, %v440
        %v442 = vrot.slane %v437, %v441
        %v448 = vunpack.c.l.b16 %v433
        %v449 = vunpack.c.l.b16 %v434
        %v450 = vunpack.c.l.b16 %v435
        %v451 = vunpack.c.l.b16 %v436
        %v452 = vpack.c.b16 %v449, %v448
        %v453 = vpack.c.b16 %v451, %v450
        %v457 = vsel %vm386, %v431, 0
        %459 = vmatprep.subr.bf16.mxu0 0
        %460 = vmatpush1.bf16.msra.mxu0 %v452
        %461 = vmatprep.subr.bf16.mxu0 0
        %462 = vmatpush1.bf16.msra.mxu0 %v453
        %463 = vmatprep.subr.bf16.mxu0 0
        %464 = vmatpush1.bf16.msra.mxu0 0
        %465 = vmatprep.subr.bf16.mxu0 0
        %466 = vmatpush1.bf16.msra.mxu0 0
        %467 = vmatprep.subr.bf16.mxu0 0
        %468 = vmatpush1.bf16.msra.mxu0 0
        %469 = vmatprep.subr.bf16.mxu0 0
        %470 = vmatpush1.bf16.msra.mxu0 0
        %471 = vmatprep.subr.bf16.mxu0 0
        %472 = vmatpush1.bf16.msra.mxu0 0
        %473 = vmatprep.subr.bf16.mxu0 0
        %474 = vmatpush1.bf16.msra.mxu0 0
        %475 = vmatprep.subr.bf16.mxu0 0
        %476 = vmatpush1.bf16.msra.mxu0 0
        %477 = vmatprep.subr.bf16.mxu0 0
        %478 = vmatpush1.bf16.msra.mxu0 0
        %479 = vmatprep.subr.bf16.mxu0 0
        %480 = vmatpush1.bf16.msra.mxu0 0
        %481 = vmatprep.subr.bf16.mxu0 0
        %482 = vmatpush1.bf16.msra.mxu0 0
        %483 = vmatprep.subr.bf16.mxu0 0
        %484 = vmatpush1.bf16.msra.mxu0 0
        %485 = vmatprep.subr.bf16.mxu0 0
        %486 = vmatpush1.bf16.msra.mxu0 0
        %487 = vmatprep.subr.bf16.mxu0 0
        %488 = vmatpush1.bf16.msra.mxu0 0
        %489 = vmatprep.subr.bf16.mxu0 0
        %490 = vmatpush1.bf16.msra.mxu0 0
        %491 = vmatprep.mubr.bf16.mxu0 0
        %492 = vmatmul.mubr.bf16.gmra.mrb[0].mxu0 %v457
        %v493 = vpop.f32.mrb[0].mxu0
        %v494 = vadd.f32 %v442, %v493
        %v495 = vpop.f32.mrb[0].mxu0
        %v496 = vpop.f32.mrb[0].mxu0
        %v497 = vadd.f32 %v442, %v496
        %v498 = vpop.f32.mrb[0].mxu0
        %499 = vdwg.mxu0
        %v500 = vld [vmem:[%s5] sm:$0xf]
        %v501 = vld [vmem:[%s5 + $0x4] sm:$0xf]
        %v502 = vld [vmem:[%s5 + $0x8] sm:$0xf]
        %v503 = vld [vmem:[%s5 + $0xc] sm:$0xf]
        %v504 = vld [vmem:[%s6] sm:$0x1]
        %v506 = vlaneseq
        %v507 = vshrl.u32 %v506, 7
        %v508 = vsub.s32 0, %v507
        %v509 = vrot.slane %v504, %v508
        %v515 = vunpack.c.l.b16 %v500
        %v516 = vunpack.c.l.b16 %v501
        %v517 = vunpack.c.l.b16 %v502
        %v518 = vunpack.c.l.b16 %v503
        %v519 = vpack.c.b16 %v516, %v515
        %v520 = vpack.c.b16 %v518, %v517
        %523 = vmatprep.subr.bf16.mxu0 0
        %524 = vmatpush1.bf16.msra.mxu0 %v519
        %525 = vmatprep.subr.bf16.mxu0 0
        %526 = vmatpush1.bf16.msra.mxu0 %v520
        %527 = vmatprep.subr.bf16.mxu0 0
        %528 = vmatpush1.bf16.msra.mxu0 0
        %529 = vmatprep.subr.bf16.mxu0 0
        %530 = vmatpush1.bf16.msra.mxu0 0
        %531 = vmatprep.subr.bf16.mxu0 0
        %532 = vmatpush1.bf16.msra.mxu0 0
        %533 = vmatprep.subr.bf16.mxu0 0
        %534 = vmatpush1.bf16.msra.mxu0 0
        %535 = vmatprep.subr.bf16.mxu0 0
        %536 = vmatpush1.bf16.msra.mxu0 0
        %537 = vmatprep.subr.bf16.mxu0 0
        %538 = vmatpush1.bf16.msra.mxu0 0
        %539 = vmatprep.subr.bf16.mxu0 0
        %540 = vmatpush1.bf16.msra.mxu0 0
        %541 = vmatprep.subr.bf16.mxu0 0
        %542 = vmatpush1.bf16.msra.mxu0 0
        %543 = vmatprep.subr.bf16.mxu0 0
        %544 = vmatpush1.bf16.msra.mxu0 0
        %545 = vmatprep.subr.bf16.mxu0 0
        %546 = vmatpush1.bf16.msra.mxu0 0
        %547 = vmatprep.subr.bf16.mxu0 0
        %548 = vmatpush1.bf16.msra.mxu0 0
        %549 = vmatprep.subr.bf16.mxu0 0
        %550 = vmatpush1.bf16.msra.mxu0 0
        %551 = vmatprep.subr.bf16.mxu0 0
        %552 = vmatpush1.bf16.msra.mxu0 0
        %553 = vmatprep.subr.bf16.mxu0 0
        %554 = vmatpush1.bf16.msra.mxu0 0
        %555 = vmatprep.mubr.bf16.mxu0 0
        %556 = vmatmul.mubr.bf16.gmra.mrb[0].mxu0 %v457
        %v557 = vpop.f32.mrb[0].mxu0
        %v558 = vadd.f32 %v509, %v557
        %v559 = vpop.f32.mrb[0].mxu0
        %v560 = vpop.f32.mrb[0].mxu0
        %v561 = vadd.f32 %v509, %v560
        %v562 = vpop.f32.mrb[0].mxu0
        %563 = vdwg.mxu0
        %v564 = vstv %s432
        %v565 = vmul.f32 %v564, %v494
        %v566 = vmul.f32 %v564, %v497
        %v567 = vxor.u32 %v565, 2147483648
        %v568 = vxor.u32 %v566, 2147483648
        %v569 = vmul.f32 %v567, 1.442695
        %v570 = vpow.pop %v569
        %v571 = vmul.f32 %v568, 1.442695
        %v572 = vpow.pop %v571
        %v573 = vadd.f32 %v570, 1.0
        %v574 = vadd.f32 %v572, 1.0
        %v575 = vrcp.pop %v573
        %v576 = vmul.f32 1.0, %v575
        %v577 = vrcp.pop %v574
        %v578 = vmul.f32 1.0, %v577
        %v579 = vmul.f32 %v494, %v576
        %v580 = vmul.f32 %v497, %v578
        %v581 = vmul.f32 %v579, %v558
        %v582 = vmul.f32 %v580, %v561
        %v583 = vpack.c.bf16 %v582, %v581
        %v584 = vld [vmem:[%s8] sm:$0xf]
        %v585 = vld [vmem:[%s8 + $0x4] sm:$0xf]
        %v586 = vld [vmem:[%s8 + $0x8] sm:$0xf]
        %v587 = vld [vmem:[%s8 + $0xc] sm:$0xf]
        %v588 = vld [vmem:[%s9] sm:$0x1]
        %v590 = vlaneseq
        %v591 = vshrl.u32 %v590, 7
        %v592 = vsub.s32 0, %v591
        %v593 = vrot.slane %v588, %v592
        %v599 = vunpack.c.l.b16 %v584
        %v600 = vunpack.c.l.b16 %v585
        %v601 = vunpack.c.l.b16 %v586
        %v602 = vunpack.c.l.b16 %v587
        %v603 = vpack.c.b16 %v600, %v599
        %v604 = vpack.c.b16 %v602, %v601
        %v608 = vsel %vm386, %v583, 0
        %610 = vmatprep.subr.bf16.mxu0 0
        %611 = vmatpush1.bf16.msra.mxu0 %v603
        %612 = vmatprep.subr.bf16.mxu0 0
        %613 = vmatpush1.bf16.msra.mxu0 %v604
        %614 = vmatprep.subr.bf16.mxu0 0
        %615 = vmatpush1.bf16.msra.mxu0 0
        %616 = vmatprep.subr.bf16.mxu0 0
        %617 = vmatpush1.bf16.msra.mxu0 0
        %618 = vmatprep.subr.bf16.mxu0 0
        %619 = vmatpush1.bf16.msra.mxu0 0
        %620 = vmatprep.subr.bf16.mxu0 0
        %621 = vmatpush1.bf16.msra.mxu0 0
        %622 = vmatprep.subr.bf16.mxu0 0
        %623 = vmatpush1.bf16.msra.mxu0 0
        %624 = vmatprep.subr.bf16.mxu0 0
        %625 = vmatpush1.bf16.msra.mxu0 0
        %626 = vmatprep.subr.bf16.mxu0 0
        %627 = vmatpush1.bf16.msra.mxu0 0
        %628 = vmatprep.subr.bf16.mxu0 0
        %629 = vmatpush1.bf16.msra.mxu0 0
        %630 = vmatprep.subr.bf16.mxu0 0
        %631 = vmatpush1.bf16.msra.mxu0 0
        %632 = vmatprep.subr.bf16.mxu0 0
        %633 = vmatpush1.bf16.msra.mxu0 0
        %634 = vmatprep.subr.bf16.mxu0 0
        %635 = vmatpush1.bf16.msra.mxu0 0
        %636 = vmatprep.subr.bf16.mxu0 0
        %637 = vmatpush1.bf16.msra.mxu0 0
        %638 = vmatprep.subr.bf16.mxu0 0
        %639 = vmatpush1.bf16.msra.mxu0 0
        %640 = vmatprep.subr.bf16.mxu0 0
        %641 = vmatpush1.bf16.msra.mxu0 0
        %642 = vmatprep.mubr.bf16.mxu0 0
        %643 = vmatmul.mubr.bf16.gmra.mrb[0].mxu0 %v608
        %v644 = vpop.f32.mrb[0].mxu0
        %v645 = vadd.f32 %v593, %v644
        %v646 = vpop.f32.mrb[0].mxu0
        %v647 = vpop.f32.mrb[0].mxu0
        %v648 = vadd.f32 %v593, %v647
        %v649 = vpop.f32.mrb[0].mxu0
        %650 = vdwg.mxu0
        %vm651 = vcmask 523264
        %652 = vst.msk [vmem:[%s353] sm:$0xff] %vm651, %v645
        %653 = vst.msk [vmem:[%s353 + $0x8] sm:$0xff] %vm651, %v648
        %s654 = sand.u32 %s248, 1
        %s655 = scalar_lea.sflag [#allocation4], %s654
        %s656 = sand.u32 %s248, 1
        %s657 = smul.addr %s656, 16
        %s658 = scalar_lea.vmem [#allocation3], %s657
        // Predicated region
        $region61: #{llama_forward.3} parent=59 // pred_check
          %p659 = pneg %p258
        $region62: #{llama_forward.3} parent=59 // pred_check_branch
          %661 = sbr.rel (%p659) target = $region64
        $region63: #{llama_forward.3} parent=59 // pred_region
          %s663 = ssub.s32 256, 256
          %664 = vsyncadd %s655, %s663
          %s665 = smul.addr %s25, 2
          %s666 = smul.addr %s665, 128
          %s667 = scalar_lea.hbm %s10, %s666
          %s668 = sshll.u32 %s658, 4
          %s669 = int_to_ptr.vmem [resolvable:$true] %s668
          %674 = dma.vmem_to_hbm [thread:$0]  %s669, 256, %s667, %s655, 128, 128, 8
        $region64: #{llama_forward.3} parent=59 // pred_fallthru
          _
      $region60: #{llama_forward.3} parent=5 // pred_fallthru
        _
      %p675 = scmp.le.s32.totalorder 2, %s20
      // Predicated region
      $region65: #{llama_forward.3} parent=5 // pred_check
        %p676 = pneg %p675
      $region66: #{llama_forward.3} parent=5 // pred_check_branch
        %678 = sbr.rel (%p676) target = $region68
      $region67: #{llama_forward.3} parent=5 // pred_region
        %s679 = ssub.s32 %s20, 2
        // Predicated region
        $region69: #{llama_forward.3} parent=67 // pred_check
          %p680 = pneg %p264
        $region70: #{llama_forward.3} parent=67 // pred_check_branch
          %682 = sbr.rel (%p680) target = $region72
        $region71: #{llama_forward.3} parent=67 // pred_region
          %s683 = sand.u32 %s249, 1
          %s684 = scalar_lea.sflag [#allocation4], %s683
          %s685 = sand.u32 %s249, 1
          %s686 = smul.addr %s685, 16
          %s687 = scalar_lea.vmem [#allocation3], %s686
          %688 = dma.done %s684, 256
        $region72: #{llama_forward.3} parent=67 // pred_fallthru
          _
      $region68: #{llama_forward.3} parent=5 // pred_fallthru
        _
    $region6: #{llama_forward.3} parent=1 // loop_footer
      %s24 = sadd.s32 1, %s20
    $region7: #{llama_forward.3} parent=1 // loop_footer_branch
      %19 = sbr.rel target = $region3
    $region8: #{llama_forward.3} parent=1 // loop_exit
      _
    %689 = vsyncpa [#allocation4], 1
    %s690 = scalar_lea.sflag [#allocation4], 1
    %691 = vsyncpa %s690, 1

// kernel: llama_forward.2
$region0: #{llama_forward.2}
  #allocation0 [shape = 'u32[]', space=smem, size = 0x4, offset = 0x4, fixed_abs, tag = 'smem constant byte address 0x4 - core index']
  #allocation1 [shape = 'u32[144,128]{1,0:T(1,128)}', space=vmem, size = 0x12000, scoped, tag = 'internal scratch']
  #allocation2 [shape = 'f32[16,32]{1,0:T(8,128)}', space=vmem, size = 0x2000, scoped, tag = 'scratch operand']
  %s0 = inlined_call_operand.vmem [shape: f32[2,16,32], index: 0, kind: input, shape index: {}]
  %s1 = inlined_call_operand.vmem [shape: f32[2,16,32], index: 1, kind: input, shape index: {}]
  %s2 = inlined_call_operand.vmem [shape: bf16[2,2,32,96], index: 2, kind: input, shape index: {}]
  %s3 = inlined_call_operand.vmem [shape: bf16[2,2,32,32], index: 3, kind: input, shape index: {}]
  %s4 = inlined_call_operand.vmem [shape: f32[2,1,32], index: 4, kind: input, shape index: {}]
  %s5 = inlined_call_operand.vmem [shape: f32[16,64], index: 5, kind: input, shape index: {}]
  %s6 = inlined_call_operand.vmem [shape: f32[16,64], index: 6, kind: input, shape index: {}]
  %s7 = inlined_call_operand.vmem [shape: bf16[64,64], index: 7, kind: input, shape index: {}]
  %s8 = inlined_call_operand.vmem [shape: f32[16,16], index: 8, kind: input, shape index: {}]
  %s9 = inlined_call_operand.vmem [shape: bf16[2,32,32], index: 9, kind: input, shape index: {}]
  %s10 = inlined_call_operand.vmem [shape: f32[2,1,32], index: 10, kind: input, shape index: {}]
  %s11 = inlined_call_operand.vmem [shape: bf16[2,32,32], index: 11, kind: input, shape index: {}]
  %s12 = inlined_call_operand.vmem [shape: f32[2,1,32], index: 12, kind: input, shape index: {}]
  %s13 = inlined_call_operand.vmem [shape: bf16[2,32,32], index: 13, kind: input, shape index: {}]
  %s14 = inlined_call_operand.vmem [shape: f32[2,1,32], index: 14, kind: input, shape index: {}]
  %s15 = inlined_call_operand.vmem [shape: f32[2], index: 15, kind: input, shape index: {}]
  %s16 = inlined_call_operand.vmem [shape: f32[2,16,32], index: 16, kind: output, shape index: {}]
  %s17 = sld [smem:[#allocation0]]
  $region109: #{llama_forward.2} parent=0
    _
  %s19 = ssub.s32 1, %s17
  %s20 = scalar_select 0, %s19, %s17
  $region1: #{llama_forward.2} parent=0
    #allocation3 [shape = 'u8[512]{0}', space=smem, size = 0x200, scoped, tag = 'input window, operand 15, single buffered']
    #allocation4 [shape = 's32[2]{0}', space=sflag, size = 0x8, scoped, tag = 'scoped memory for llama_forward.2']
    %21 = vsyncpa [#allocation4], 0
    loop: start=0, step=1, limit=6
    $region2: #{llama_forward.2} parent=1 // loop_pre_header
      _
    $region3: #{llama_forward.2} parent=1 // loop_header
      %s23 = sphi 0, %s27
      %p24 = scmp.ge.s32.totalorder %s23, 6
      %s30 = sphi 0, %s42
      %s31 = sphi 0, %s38
      %s32 = sphi 0, %s30
      %s33 = sphi 0, %s31
      %s34 = sphi 0, %s32
      %s35 = sphi 0, %s33
      %s45 = sphi 0, %s47
      %s48 = sphi 0, %s45
      %s49 = sphi 0, %s48
      %s65 = sphi 0, %s49
      %s71 = sphi 0, %s73
      %s74 = sphi 0, %s71
      %s75 = sphi 0, %s74
      %s91 = sphi 0, %s75
      %s97 = sphi 0, %s99
      %s100 = sphi 0, %s97
      %s101 = sphi 0, %s100
      %s117 = sphi 0, %s101
      %s123 = sphi 0, %s125
      %s126 = sphi 0, %s123
      %s127 = sphi 0, %s126
      %s143 = sphi 0, %s127
      %s149 = sphi 0, %s151
      %s152 = sphi 0, %s149
      %s153 = sphi 0, %s152
      %s169 = sphi 0, %s153
      %s173 = sphi 0, %s173
      %s175 = sphi 0, %s173
      %s176 = sphi 0, %s175
      %s190 = sphi 0, %s176
      %s194 = sphi 0, %s194
      %s196 = sphi 0, %s194
      %s197 = sphi 0, %s196
      %s211 = sphi 0, %s197
      %s215 = sphi 0, %s215
      %s217 = sphi 0, %s215
      %s218 = sphi 0, %s217
      %s232 = sphi 0, %s218
      %s236 = sphi 0, %s236
      %s238 = sphi 0, %s236
      %s239 = sphi 0, %s238
      %s253 = sphi 0, %s239
      %s259 = sphi 0, %s261
      %s262 = sphi 0, %s259
      %s263 = sphi 0, %s262
      %s279 = sphi 0, %s263
      %s285 = sphi 0, %s287
      %s288 = sphi 0, %s285
      %s289 = sphi 0, %s288
      %s305 = sphi 0, %s289
      %s311 = sphi 0, %s313
      %s314 = sphi 0, %s311
      %s315 = sphi 0, %s314
      %s331 = sphi 0, %s315
      %s337 = sphi 0, %s339
      %s340 = sphi 0, %s337
      %s341 = sphi 0, %s340
      %s357 = sphi 0, %s341
      %s363 = sphi 0, %s365
      %s366 = sphi 0, %s363
      %s367 = sphi 0, %s366
      %s383 = sphi 0, %s367
      %s389 = sphi 0, %s391
      %s392 = sphi 0, %s389
      %s393 = sphi 0, %s392
      %s409 = sphi 0, %s393
      %s413 = sphi 0, %s413
      %s415 = sphi 0, %s413
      %s416 = sphi 0, %s415
      %s430 = sphi 0, %s416
      %s436 = sphi 0, %s438
      %s439 = sphi 0, %s436
      %s440 = sphi 0, %s439
      %s456 = sphi 0, %s440
    $region4: #{llama_forward.2} parent=1 // loop_header_branch
      %26 = sbr.rel (%p24) target = $region8
    $region5: #{llama_forward.2} parent=1 // loop_body
      %s28 = ssub.s32 %s23, 1
      %s29 = ssub.s32 %s23, 2
      %s36 = sadd.s32 1, %s31
      %p37 = scmp.ge.s32.totalorder %s36, 2
      %s38 = scalar_select %p37, 0, %s36
      %s39 = sadd.s32 1, %s30
      %s40 = scalar_select %p37, %s39, %s30
      %p41 = scmp.ge.s32.totalorder %s40, 2
      %s42 = scalar_select %p41, 0, %s40
      %s43 = ssub.s32 %s30, %s42
      %p44 = scmp.eq.s32.totalorder %s43, 0
      %s46 = sadd.s32 %s45, 1
      %s47 = scalar_select %p44, %s45, %s46
      %p50 = pneg %p44
      %p51 = scmp.eq.s32.totalorder %s23, 3
      %p52 = por %p50, %p51
      %p53 = scmp.ne.s32.totalorder %s45, %s48
      %p54 = scmp.eq.s32.totalorder %s23, 0
      %p55 = por %p53, %p54
      %p56 = scmp.ne.s32.totalorder %s45, %s48
      %p57 = scmp.eq.s32.totalorder %s28, 3
      %p58 = por %p56, %p57
      %p59 = scmp.ne.s32.totalorder %s48, %s49
      %p60 = scmp.eq.s32.totalorder %s28, 0
      %p61 = por %p59, %p60
      %p62 = scmp.ne.s32.totalorder %s48, %s49
      %p63 = scmp.eq.s32.totalorder %s29, 3
      %p64 = por %p62, %p63
      %p66 = scmp.ne.s32.totalorder %s49, %s65
      %p67 = scmp.eq.s32.totalorder %s29, 0
      %p68 = por %p66, %p67
      %s69 = ssub.s32 %s31, %s38
      %p70 = scmp.eq.s32.totalorder %s69, 0
      %s72 = sadd.s32 %s71, 1
      %s73 = scalar_select %p70, %s71, %s72
      %p76 = pneg %p70
      %p77 = scmp.eq.s32.totalorder %s23, 3
      %p78 = por %p76, %p77
      %p79 = scmp.ne.s32.totalorder %s71, %s74
      %p80 = scmp.eq.s32.totalorder %s23, 0
      %p81 = por %p79, %p80
      %p82 = scmp.ne.s32.totalorder %s71, %s74
      %p83 = scmp.eq.s32.totalorder %s28, 3
      %p84 = por %p82, %p83
      %p85 = scmp.ne.s32.totalorder %s74, %s75
      %p86 = scmp.eq.s32.totalorder %s28, 0
      %p87 = por %p85, %p86
      %p88 = scmp.ne.s32.totalorder %s74, %s75
      %p89 = scmp.eq.s32.totalorder %s29, 3
      %p90 = por %p88, %p89
      %p92 = scmp.ne.s32.totalorder %s75, %s91
      %p93 = scmp.eq.s32.totalorder %s29, 0
      %p94 = por %p92, %p93
      %s95 = ssub.s32 %s31, %s38
      %p96 = scmp.eq.s32.totalorder %s95, 0
      %s98 = sadd.s32 %s97, 1
      %s99 = scalar_select %p96, %s97, %s98
      %p102 = pneg %p96
      %p103 = scmp.eq.s32.totalorder %s23, 3
      %p104 = por %p102, %p103
      %p105 = scmp.ne.s32.totalorder %s97, %s100
      %p106 = scmp.eq.s32.totalorder %s23, 0
      %p107 = por %p105, %p106
      %p108 = scmp.ne.s32.totalorder %s97, %s100
      %p109 = scmp.eq.s32.totalorder %s28, 3
      %p110 = por %p108, %p109
      %p111 = scmp.ne.s32.totalorder %s100, %s101
      %p112 = scmp.eq.s32.totalorder %s28, 0
      %p113 = por %p111, %p112
      %p114 = scmp.ne.s32.totalorder %s100, %s101
      %p115 = scmp.eq.s32.totalorder %s29, 3
      %p116 = por %p114, %p115
      %p118 = scmp.ne.s32.totalorder %s101, %s117
      %p119 = scmp.eq.s32.totalorder %s29, 0
      %p120 = por %p118, %p119
      %s121 = ssub.s32 %s31, %s38
      %p122 = scmp.eq.s32.totalorder %s121, 0
      %s124 = sadd.s32 %s123, 1
      %s125 = scalar_select %p122, %s123, %s124
      %p128 = pneg %p122
      %p129 = scmp.eq.s32.totalorder %s23, 3
      %p130 = por %p128, %p129
      %p131 = scmp.ne.s32.totalorder %s123, %s126
      %p132 = scmp.eq.s32.totalorder %s23, 0
      %p133 = por %p131, %p132
      %p134 = scmp.ne.s32.totalorder %s123, %s126
      %p135 = scmp.eq.s32.totalorder %s28, 3
      %p136 = por %p134, %p135
      %p137 = scmp.ne.s32.totalorder %s126, %s127
      %p138 = scmp.eq.s32.totalorder %s28, 0
      %p139 = por %p137, %p138
      %p140 = scmp.ne.s32.totalorder %s126, %s127
      %p141 = scmp.eq.s32.totalorder %s29, 3
      %p142 = por %p140, %p141
      %p144 = scmp.ne.s32.totalorder %s127, %s143
      %p145 = scmp.eq.s32.totalorder %s29, 0
      %p146 = por %p144, %p145
      %s147 = ssub.s32 %s31, %s38
      %p148 = scmp.eq.s32.totalorder %s147, 0
      %s150 = sadd.s32 %s149, 1
      %s151 = scalar_select %p148, %s149, %s150
      %p154 = pneg %p148
      %p155 = scmp.eq.s32.totalorder %s23, 3
      %p156 = por %p154, %p155
      %p157 = scmp.ne.s32.totalorder %s149, %s152
      %p158 = scmp.eq.s32.totalorder %s23, 0
      %p159 = por %p157, %p158
      %p160 = scmp.ne.s32.totalorder %s149, %s152
      %p161 = scmp.eq.s32.totalorder %s28, 3
      %p162 = por %p160, %p161
      %p163 = scmp.ne.s32.totalorder %s152, %s153
      %p164 = scmp.eq.s32.totalorder %s28, 0
      %p165 = por %p163, %p164
      %p166 = scmp.ne.s32.totalorder %s152, %s153
      %p167 = scmp.eq.s32.totalorder %s29, 3
      %p168 = por %p166, %p167
      %p170 = scmp.ne.s32.totalorder %s153, %s169
      %p171 = scmp.eq.s32.totalorder %s29, 0
      %p172 = por %p170, %p171
      %s174 = sadd.s32 %s173, 1
      %p177 = scmp.eq.s32.totalorder %s23, 3
      %p178 = scmp.ne.s32.totalorder %s173, %s175
      %p179 = scmp.eq.s32.totalorder %s23, 0
      %p180 = por %p178, %p179
      %p181 = scmp.ne.s32.totalorder %s173, %s175
      %p182 = scmp.eq.s32.totalorder %s28, 3
      %p183 = por %p181, %p182
      %p184 = scmp.ne.s32.totalorder %s175, %s176
      %p185 = scmp.eq.s32.totalorder %s28, 0
      %p186 = por %p184, %p185
      %p187 = scmp.ne.s32.totalorder %s175, %s176
      %p188 = scmp.eq.s32.totalorder %s29, 3
      %p189 = por %p187, %p188
      %p191 = scmp.ne.s32.totalorder %s176, %s190
      %p192 = scmp.eq.s32.totalorder %s29, 0
      %p193 = por %p191, %p192
      %s195 = sadd.s32 %s194, 1
      %p198 = scmp.eq.s32.totalorder %s23, 3
      %p199 = scmp.ne.s32.totalorder %s194, %s196
      %p200 = scmp.eq.s32.totalorder %s23, 0
      %p201 = por %p199, %p200
      %p202 = scmp.ne.s32.totalorder %s194, %s196
      %p203 = scmp.eq.s32.totalorder %s28, 3
      %p204 = por %p202, %p203
      %p205 = scmp.ne.s32.totalorder %s196, %s197
      %p206 = scmp.eq.s32.totalorder %s28, 0
      %p207 = por %p205, %p206
      %p208 = scmp.ne.s32.totalorder %s196, %s197
      %p209 = scmp.eq.s32.totalorder %s29, 3
      %p210 = por %p208, %p209
      %p212 = scmp.ne.s32.totalorder %s197, %s211
      %p213 = scmp.eq.s32.totalorder %s29, 0
      %p214 = por %p212, %p213
      %s216 = sadd.s32 %s215, 1
      %p219 = scmp.eq.s32.totalorder %s23, 3
      %p220 = scmp.ne.s32.totalorder %s215, %s217
      %p221 = scmp.eq.s32.totalorder %s23, 0
      %p222 = por %p220, %p221
      %p223 = scmp.ne.s32.totalorder %s215, %s217
      %p224 = scmp.eq.s32.totalorder %s28, 3
      %p225 = por %p223, %p224
      %p226 = scmp.ne.s32.totalorder %s217, %s218
      %p227 = scmp.eq.s32.totalorder %s28, 0
      %p228 = por %p226, %p227
      %p229 = scmp.ne.s32.totalorder %s217, %s218
      %p230 = scmp.eq.s32.totalorder %s29, 3
      %p231 = por %p229, %p230
      %p233 = scmp.ne.s32.totalorder %s218, %s232
      %p234 = scmp.eq.s32.totalorder %s29, 0
      %p235 = por %p233, %p234
      %s237 = sadd.s32 %s236, 1
      %p240 = scmp.eq.s32.totalorder %s23, 3
      %p241 = scmp.ne.s32.totalorder %s236, %s238
      %p242 = scmp.eq.s32.totalorder %s23, 0
      %p243 = por %p241, %p242
      %p244 = scmp.ne.s32.totalorder %s236, %s238
      %p245 = scmp.eq.s32.totalorder %s28, 3
      %p246 = por %p244, %p245
      %p247 = scmp.ne.s32.totalorder %s238, %s239
      %p248 = scmp.eq.s32.totalorder %s28, 0
      %p249 = por %p247, %p248
      %p250 = scmp.ne.s32.totalorder %s238, %s239
      %p251 = scmp.eq.s32.totalorder %s29, 3
      %p252 = por %p250, %p251
      %p254 = scmp.ne.s32.totalorder %s239, %s253
      %p255 = scmp.eq.s32.totalorder %s29, 0
      %p256 = por %p254, %p255
      %s257 = ssub.s32 %s31, %s38
      %p258 = scmp.eq.s32.totalorder %s257, 0
      %s260 = sadd.s32 %s259, 1
      %s261 = scalar_select %p258, %s259, %s260
      %p264 = pneg %p258
      %p265 = scmp.eq.s32.totalorder %s23, 3
      %p266 = por %p264, %p265
      %p267 = scmp.ne.s32.totalorder %s259, %s262
      %p268 = scmp.eq.s32.totalorder %s23, 0
      %p269 = por %p267, %p268
      %p270 = scmp.ne.s32.totalorder %s259, %s262
      %p271 = scmp.eq.s32.totalorder %s28, 3
      %p272 = por %p270, %p271
      %p273 = scmp.ne.s32.totalorder %s262, %s263
      %p274 = scmp.eq.s32.totalorder %s28, 0
      %p275 = por %p273, %p274
      %p276 = scmp.ne.s32.totalorder %s262, %s263
      %p277 = scmp.eq.s32.totalorder %s29, 3
      %p278 = por %p276, %p277
      %p280 = scmp.ne.s32.totalorder %s263, %s279
      %p281 = scmp.eq.s32.totalorder %s29, 0
      %p282 = por %p280, %p281
      %s283 = ssub.s32 %s31, %s38
      %p284 = scmp.eq.s32.totalorder %s283, 0
      %s286 = sadd.s32 %s285, 1
      %s287 = scalar_select %p284, %s285, %s286
      %p290 = pneg %p284
      %p291 = scmp.eq.s32.totalorder %s23, 3
      %p292 = por %p290, %p291
      %p293 = scmp.ne.s32.totalorder %s285, %s288
      %p294 = scmp.eq.s32.totalorder %s23, 0
      %p295 = por %p293, %p294
      %p296 = scmp.ne.s32.totalorder %s285, %s288
      %p297 = scmp.eq.s32.totalorder %s28, 3
      %p298 = por %p296, %p297
      %p299 = scmp.ne.s32.totalorder %s288, %s289
      %p300 = scmp.eq.s32.totalorder %s28, 0
      %p301 = por %p299, %p300
      %p302 = scmp.ne.s32.totalorder %s288, %s289
      %p303 = scmp.eq.s32.totalorder %s29, 3
      %p304 = por %p302, %p303
      %p306 = scmp.ne.s32.totalorder %s289, %s305
      %p307 = scmp.eq.s32.totalorder %s29, 0
      %p308 = por %p306, %p307
      %s309 = ssub.s32 %s31, %s38
      %p310 = scmp.eq.s32.totalorder %s309, 0
      %s312 = sadd.s32 %s311, 1
      %s313 = scalar_select %p310, %s311, %s312
      %p316 = pneg %p310
      %p317 = scmp.eq.s32.totalorder %s23, 3
      %p318 = por %p316, %p317
      %p319 = scmp.ne.s32.totalorder %s311, %s314
      %p320 = scmp.eq.s32.totalorder %s23, 0
      %p321 = por %p319, %p320
      %p322 = scmp.ne.s32.totalorder %s311, %s314
      %p323 = scmp.eq.s32.totalorder %s28, 3
      %p324 = por %p322, %p323
      %p325 = scmp.ne.s32.totalorder %s314, %s315
      %p326 = scmp.eq.s32.totalorder %s28, 0
      %p327 = por %p325, %p326
      %p328 = scmp.ne.s32.totalorder %s314, %s315
      %p329 = scmp.eq.s32.totalorder %s29, 3
      %p330 = por %p328, %p329
      %p332 = scmp.ne.s32.totalorder %s315, %s331
      %p333 = scmp.eq.s32.totalorder %s29, 0
      %p334 = por %p332, %p333
      %s335 = ssub.s32 %s31, %s38
      %p336 = scmp.eq.s32.totalorder %s335, 0
      %s338 = sadd.s32 %s337, 1
      %s339 = scalar_select %p336, %s337, %s338
      %p342 = pneg %p336
      %p343 = scmp.eq.s32.totalorder %s23, 3
      %p344 = por %p342, %p343
      %p345 = scmp.ne.s32.totalorder %s337, %s340
      %p346 = scmp.eq.s32.totalorder %s23, 0
      %p347 = por %p345, %p346
      %p348 = scmp.ne.s32.totalorder %s337, %s340
      %p349 = scmp.eq.s32.totalorder %s28, 3
      %p350 = por %p348, %p349
      %p351 = scmp.ne.s32.totalorder %s340, %s341
      %p352 = scmp.eq.s32.totalorder %s28, 0
      %p353 = por %p351, %p352
      %p354 = scmp.ne.s32.totalorder %s340, %s341
      %p355 = scmp.eq.s32.totalorder %s29, 3
      %p356 = por %p354, %p355
      %p358 = scmp.ne.s32.totalorder %s341, %s357
      %p359 = scmp.eq.s32.totalorder %s29, 0
      %p360 = por %p358, %p359
      %s361 = ssub.s32 %s31, %s38
      %p362 = scmp.eq.s32.totalorder %s361, 0
      %s364 = sadd.s32 %s363, 1
      %s365 = scalar_select %p362, %s363, %s364
      %p368 = pneg %p362
      %p369 = scmp.eq.s32.totalorder %s23, 3
      %p370 = por %p368, %p369
      %p371 = scmp.ne.s32.totalorder %s363, %s366
      %p372 = scmp.eq.s32.totalorder %s23, 0
      %p373 = por %p371, %p372
      %p374 = scmp.ne.s32.totalorder %s363, %s366
      %p375 = scmp.eq.s32.totalorder %s28, 3
      %p376 = por %p374, %p375
      %p377 = scmp.ne.s32.totalorder %s366, %s367
      %p378 = scmp.eq.s32.totalorder %s28, 0
      %p379 = por %p377, %p378
      %p380 = scmp.ne.s32.totalorder %s366, %s367
      %p381 = scmp.eq.s32.totalorder %s29, 3
      %p382 = por %p380, %p381
      %p384 = scmp.ne.s32.totalorder %s367, %s383
      %p385 = scmp.eq.s32.totalorder %s29, 0
      %p386 = por %p384, %p385
      %s387 = ssub.s32 %s31, %s38
      %p388 = scmp.eq.s32.totalorder %s387, 0
      %s390 = sadd.s32 %s389, 1
      %s391 = scalar_select %p388, %s389, %s390
      %p394 = pneg %p388
      %p395 = scmp.eq.s32.totalorder %s23, 3
      %p396 = por %p394, %p395
      %p397 = scmp.ne.s32.totalorder %s389, %s392
      %p398 = scmp.eq.s32.totalorder %s23, 0
      %p399 = por %p397, %p398
      %p400 = scmp.ne.s32.totalorder %s389, %s392
      %p401 = scmp.eq.s32.totalorder %s28, 3
      %p402 = por %p400, %p401
      %p403 = scmp.ne.s32.totalorder %s392, %s393
      %p404 = scmp.eq.s32.totalorder %s28, 0
      %p405 = por %p403, %p404
      %p406 = scmp.ne.s32.totalorder %s392, %s393
      %p407 = scmp.eq.s32.totalorder %s29, 3
      %p408 = por %p406, %p407
      %p410 = scmp.ne.s32.totalorder %s393, %s409
      %p411 = scmp.eq.s32.totalorder %s29, 0
      %p412 = por %p410, %p411
      %s414 = sadd.s32 %s413, 1
      %p417 = scmp.eq.s32.totalorder %s23, 3
      %p418 = scmp.ne.s32.totalorder %s413, %s415
      %p419 = scmp.eq.s32.totalorder %s23, 0
      %p420 = por %p418, %p419
      %p421 = scmp.ne.s32.totalorder %s413, %s415
      %p422 = scmp.eq.s32.totalorder %s28, 3
      %p423 = por %p421, %p422
      %p424 = scmp.ne.s32.totalorder %s415, %s416
      %p425 = scmp.eq.s32.totalorder %s28, 0
      %p426 = por %p424, %p425
      %p427 = scmp.ne.s32.totalorder %s415, %s416
      %p428 = scmp.eq.s32.totalorder %s29, 3
      %p429 = por %p427, %p428
      %p431 = scmp.ne.s32.totalorder %s416, %s430
      %p432 = scmp.eq.s32.totalorder %s29, 0
      %p433 = por %p431, %p432
      %s434 = ssub.s32 %s30, %s42
      %p435 = scmp.eq.s32.totalorder %s434, 0
      %s437 = sadd.s32 %s436, 1
      %s438 = scalar_select %p435, %s436, %s437
      %p441 = pneg %p435
      %p442 = scmp.eq.s32.totalorder %s23, 3
      %p443 = por %p441, %p442
      %p444 = scmp.ne.s32.totalorder %s436, %s439
      %p445 = scmp.eq.s32.totalorder %s23, 0
      %p446 = por %p444, %p445
      %p447 = scmp.ne.s32.totalorder %s436, %s439
      %p448 = scmp.eq.s32.totalorder %s28, 3
      %p449 = por %p447, %p448
      %p450 = scmp.ne.s32.totalorder %s439, %s440
      %p451 = scmp.eq.s32.totalorder %s28, 0
      %p452 = por %p450, %p451
      %p453 = scmp.ne.s32.totalorder %s439, %s440
      %p454 = scmp.eq.s32.totalorder %s29, 3
      %p455 = por %p453, %p454
      %p457 = scmp.ne.s32.totalorder %s440, %s456
      %p458 = scmp.eq.s32.totalorder %s29, 0
      %p459 = por %p457, %p458
      %p460 = scmp.le.s32.totalorder 1, %s23
      %p461 = scmp.lt.s32.totalorder %s23, 5
      %p462 = pnand %p460, %p461
      %p463 = pneg %p462
      // Predicated region
      $region9: #{llama_forward.2} parent=5 // pred_check
        _
      $region10: #{llama_forward.2} parent=5 // pred_check_branch
        %465 = sbr.rel (%p462) target = $region12
      $region11: #{llama_forward.2} parent=5 // pred_region
        %s466 = ssub.s32 %s23, 1
        // Predicated region
        $region13: #{llama_forward.2} parent=11 // pred_check
          %p467 = pneg %p186
        $region14: #{llama_forward.2} parent=11 // pred_check_branch
          %469 = sbr.rel (%p467) target = $region16
        $region15: #{llama_forward.2} parent=11 // pred_region
          _
        $region16: #{llama_forward.2} parent=11 // pred_fallthru
          _
        // Predicated region
        $region17: #{llama_forward.2} parent=11 // pred_check
          %p470 = pneg %p207
        $region18: #{llama_forward.2} parent=11 // pred_check_branch
          %472 = sbr.rel (%p470) target = $region20
        $region19: #{llama_forward.2} parent=11 // pred_region
          _
        $region20: #{llama_forward.2} parent=11 // pred_fallthru
          _
        // Predicated region
        $region21: #{llama_forward.2} parent=11 // pred_check
          %p473 = pneg %p228
        $region22: #{llama_forward.2} parent=11 // pred_check_branch
          %475 = sbr.rel (%p473) target = $region24
        $region23: #{llama_forward.2} parent=11 // pred_region
          _
        $region24: #{llama_forward.2} parent=11 // pred_fallthru
          _
        // Predicated region
        $region25: #{llama_forward.2} parent=11 // pred_check
          %p476 = pneg %p249
        $region26: #{llama_forward.2} parent=11 // pred_check_branch
          %478 = sbr.rel (%p476) target = $region28
        $region27: #{llama_forward.2} parent=11 // pred_region
          _
        $region28: #{llama_forward.2} parent=11 // pred_fallthru
          _
        // Predicated region
        $region29: #{llama_forward.2} parent=11 // pred_check
          %p479 = pneg %p426
        $region30: #{llama_forward.2} parent=11 // pred_check_branch
          %481 = sbr.rel (%p479) target = $region32
        $region31: #{llama_forward.2} parent=11 // pred_region
          %s483 = ssub.s32 16, 16
          %484 = vsyncadd [#allocation4], %s483
          %s486 = sshll.u32 %s15, 4
          %s487 = int_to_ptr.vmem [resolvable:$true] %s486
          %489 = dma.vmem_to_smem %s487, 16, [#allocation3], [#allocation4]
        $region32: #{llama_forward.2} parent=11 // pred_fallthru
          _
      $region12: #{llama_forward.2} parent=5 // pred_fallthru
        _
      %p490 = scmp.lt.s32.totalorder %s23, 4
      // Predicated region
      $region33: #{llama_forward.2} parent=5 // pred_check
        %p491 = pneg %p490
      $region34: #{llama_forward.2} parent=5 // pred_check_branch
        %493 = sbr.rel (%p491) target = $region36
      $region35: #{llama_forward.2} parent=5 // pred_region
        // Predicated region
        $region37: #{llama_forward.2} parent=35 // pred_check
          %p494 = pneg %p55
        $region38: #{llama_forward.2} parent=35 // pred_check_branch
          %496 = sbr.rel (%p494) target = $region40
        $region39: #{llama_forward.2} parent=35 // pred_region
          %p497 = scmp.lt.s32.totalorder %s30, 1
          %s498 = scalar_select %p497, %s30, 1
          %s499 = smul.addr %s498, 2
          %s500 = smul.addr %s499, 8
          %s501 = scalar_lea.vmem %s0, %s500
        $region40: #{llama_forward.2} parent=35 // pred_fallthru
          _
        // Predicated region
        $region41: #{llama_forward.2} parent=35 // pred_check
          %p502 = pneg %p81
        $region42: #{llama_forward.2} parent=35 // pred_check_branch
          %504 = sbr.rel (%p502) target = $region44
        $region43: #{llama_forward.2} parent=35 // pred_region
          %p505 = scmp.lt.s32.totalorder %s31, 1
          %s506 = scalar_select %p505, %s31, 1
          %s507 = smul.addr %s506, 2
          %s508 = smul.addr %s507, 8
          %s509 = scalar_lea.vmem %s1, %s508
        $region44: #{llama_forward.2} parent=35 // pred_fallthru
          _
        // Predicated region
        $region45: #{llama_forward.2} parent=35 // pred_check
          %p510 = pneg %p107
        $region46: #{llama_forward.2} parent=35 // pred_check_branch
          %512 = sbr.rel (%p510) target = $region48
        $region47: #{llama_forward.2} parent=35 // pred_region
          %p513 = scmp.lt.s32.totalorder %s31, 1
          %s514 = scalar_select %p513, %s31, 1
          %s515 = smul.addr %s514, 8
          %s516 = smul.addr %s515, 4
          %s517 = scalar_lea.vmem %s2, %s516
        $region48: #{llama_forward.2} parent=35 // pred_fallthru
          _
        // Predicated region
        $region49: #{llama_forward.2} parent=35 // pred_check
          %p518 = pneg %p133
        $region50: #{llama_forward.2} parent=35 // pred_check_branch
          %520 = sbr.rel (%p518) target = $region52
        $region51: #{llama_forward.2} parent=35 // pred_region
          %p521 = scmp.lt.s32.totalorder %s31, 1
          %s522 = scalar_select %p521, %s31, 1
          %s523 = smul.addr %s522, 8
          %s524 = smul.addr %s523, 4
          %s525 = scalar_lea.vmem %s3, %s524
        $region52: #{llama_forward.2} parent=35 // pred_fallthru
          _
        // Predicated region
        $region53: #{llama_forward.2} parent=35 // pred_check
          %p526 = pneg %p159
        $region54: #{llama_forward.2} parent=35 // pred_check_branch
          %528 = sbr.rel (%p526) target = $region56
        $region55: #{llama_forward.2} parent=35 // pred_region
          %p529 = scmp.lt.s32.totalorder %s31, 1
          %s530 = scalar_select %p529, %s31, 1
          %s531 = scalar_lea.vmem %s4, %s530
        $region56: #{llama_forward.2} parent=35 // pred_fallthru
          _
        // Predicated region
        $region57: #{llama_forward.2} parent=35 // pred_check
          %p532 = pneg %p269
        $region58: #{llama_forward.2} parent=35 // pred_check_branch
          %534 = sbr.rel (%p532) target = $region60
        $region59: #{llama_forward.2} parent=35 // pred_region
          %p535 = scmp.lt.s32.totalorder %s31, 1
          %s536 = scalar_select %p535, %s31, 1
          %s537 = smul.addr %s536, 4
          %s538 = smul.addr %s537, 4
          %s539 = scalar_lea.vmem %s9, %s538
        $region60: #{llama_forward.2} parent=35 // pred_fallthru
          _
        // Predicated region
        $region61: #{llama_forward.2} parent=35 // pred_check
          %p540 = pneg %p295
        $region62: #{llama_forward.2} parent=35 // pred_check_branch
          %542 = sbr.rel (%p540) target = $region64
        $region63: #{llama_forward.2} parent=35 // pred_region
          %p543 = scmp.lt.s32.totalorder %s31, 1
          %s544 = scalar_select %p543, %s31, 1
          %s545 = scalar_lea.vmem %s10, %s544
        $region64: #{llama_forward.2} parent=35 // pred_fallthru
          _
        // Predicated region
        $region65: #{llama_forward.2} parent=35 // pred_check
          %p546 = pneg %p321
        $region66: #{llama_forward.2} parent=35 // pred_check_branch
          %548 = sbr.rel (%p546) target = $region68
        $region67: #{llama_forward.2} parent=35 // pred_region
          %p549 = scmp.lt.s32.totalorder %s31, 1
          %s550 = scalar_select %p549, %s31, 1
          %s551 = smul.addr %s550, 4
          %s552 = smul.addr %s551, 4
          %s553 = scalar_lea.vmem %s11, %s552
        $region68: #{llama_forward.2} parent=35 // pred_fallthru
          _
        // Predicated region
        $region69: #{llama_forward.2} parent=35 // pred_check
          %p554 = pneg %p347
        $region70: #{llama_forward.2} parent=35 // pred_check_branch
          %556 = sbr.rel (%p554) target = $region72
        $region71: #{llama_forward.2} parent=35 // pred_region
          %p557 = scmp.lt.s32.totalorder %s31, 1
          %s558 = scalar_select %p557, %s31, 1
          %s559 = scalar_lea.vmem %s12, %s558
        $region72: #{llama_forward.2} parent=35 // pred_fallthru
          _
        // Predicated region
        $region73: #{llama_forward.2} parent=35 // pred_check
          %p560 = pneg %p373
        $region74: #{llama_forward.2} parent=35 // pred_check_branch
          %562 = sbr.rel (%p560) target = $region76
        $region75: #{llama_forward.2} parent=35 // pred_region
          %p563 = scmp.lt.s32.totalorder %s31, 1
          %s564 = scalar_select %p563, %s31, 1
          %s565 = smul.addr %s564, 4
          %s566 = smul.addr %s565, 4
          %s567 = scalar_lea.vmem %s13, %s566
        $region76: #{llama_forward.2} parent=35 // pred_fallthru
          _
        // Predicated region
        $region77: #{llama_forward.2} parent=35 // pred_check
          %p568 = pneg %p399
        $region78: #{llama_forward.2} parent=35 // pred_check_branch
          %570 = sbr.rel (%p568) target = $region80
        $region79: #{llama_forward.2} parent=35 // pred_region
          %p571 = scmp.lt.s32.totalorder %s31, 1
          %s572 = scalar_select %p571, %s31, 1
          %s573 = scalar_lea.vmem %s14, %s572
        $region80: #{llama_forward.2} parent=35 // pred_fallthru
          _
      $region36: #{llama_forward.2} parent=5 // pred_fallthru
        _
      %p574 = scmp.le.s32.totalorder 1, %s23
      %p575 = scmp.lt.s32.totalorder %s23, 5
      %p576 = pnand %p574, %p575
      %p577 = pneg %p576
      // Predicated region
      $region81: #{llama_forward.2} parent=5 // pred_check
        _
      $region82: #{llama_forward.2} parent=5 // pred_check_branch
        %579 = sbr.rel (%p576) target = $region84
      $region83: #{llama_forward.2} parent=5 // pred_region
        %s580 = ssub.s32 %s23, 1
        // Predicated region
        $region85: #{llama_forward.2} parent=83 // pred_check
          %p581 = pneg %p426
        $region86: #{llama_forward.2} parent=83 // pred_check_branch
          %583 = sbr.rel (%p581) target = $region88
        $region87: #{llama_forward.2} parent=83 // pred_region
          %584 = dma.done [#allocation4], 16
        $region88: #{llama_forward.2} parent=83 // pred_fallthru
          _
        %585 = sfence
        %p586 = scmp.lt.s32.totalorder %s32, 1
        %s587 = scalar_select %p586, %s32, 1
        %s588 = smul.addr %s587, 2
        %s589 = smul.addr %s588, 8
        %s590 = scalar_lea.vmem %s0, %s589
        %p591 = pneg %p61
        %p592 = pneg %p58
        %p593 = scmp.lt.s32.totalorder %s33, 1
        %s594 = scalar_select %p593, %s33, 1
        %s595 = smul.addr %s594, 2
        %s596 = smul.addr %s595, 8
        %s597 = scalar_lea.vmem %s1, %s596
        %p598 = pneg %p87
        %p599 = pneg %p84
        %p600 = scmp.lt.s32.totalorder %s33, 1
        %s601 = scalar_select %p600, %s33, 1
        %s602 = smul.addr %s601, 8
        %s603 = smul.addr %s602, 4
        %s604 = scalar_lea.vmem %s2, %s603
        %p605 = pneg %p113
        %p606 = pneg %p110
        %p607 = scmp.lt.s32.totalorder %s33, 1
        %s608 = scalar_select %p607, %s33, 1
        %s609 = smul.addr %s608, 8
        %s610 = smul.addr %s609, 4
        %s611 = scalar_lea.vmem %s3, %s610
        %p612 = pneg %p139
        %p613 = pneg %p136
        %p614 = scmp.lt.s32.totalorder %s33, 1
        %s615 = scalar_select %p614, %s33, 1
        %s616 = scalar_lea.vmem %s4, %s615
        %p617 = pneg %p165
        %p618 = pneg %p162
        %p619 = pneg %p186
        %p620 = pneg %p183
        %p621 = pneg %p207
        %p622 = pneg %p204
        %p623 = pneg %p228
        %p624 = pneg %p225
        %p625 = pneg %p249
        %p626 = pneg %p246
        %p627 = scmp.lt.s32.totalorder %s33, 1
        %s628 = scalar_select %p627, %s33, 1
        %s629 = smul.addr %s628, 4
        %s630 = smul.addr %s629, 4
        %s631 = scalar_lea.vmem %s9, %s630
        %p632 = pneg %p275
        %p633 = pneg %p272
        %p634 = scmp.lt.s32.totalorder %s33, 1
        %s635 = scalar_select %p634, %s33, 1
        %s636 = scalar_lea.vmem %s10, %s635
        %p637 = pneg %p301
        %p638 = pneg %p298
        %p639 = scmp.lt.s32.totalorder %s33, 1
        %s640 = scalar_select %p639, %s33, 1
        %s641 = smul.addr %s640, 4
        %s642 = smul.addr %s641, 4
        %s643 = scalar_lea.vmem %s11, %s642
        %p644 = pneg %p327
        %p645 = pneg %p324
        %p646 = scmp.lt.s32.totalorder %s33, 1
        %s647 = scalar_select %p646, %s33, 1
        %s648 = scalar_lea.vmem %s12, %s647
        %p649 = pneg %p353
        %p650 = pneg %p350
        %p651 = scmp.lt.s32.totalorder %s33, 1
        %s652 = scalar_select %p651, %s33, 1
        %s653 = smul.addr %s652, 4
        %s654 = smul.addr %s653, 4
        %s655 = scalar_lea.vmem %s13, %s654
        %p656 = pneg %p379
        %p657 = pneg %p376
        %p658 = scmp.lt.s32.totalorder %s33, 1
        %s659 = scalar_select %p658, %s33, 1
        %s660 = scalar_lea.vmem %s14, %s659
        %p661 = pneg %p405
        %p662 = pneg %p402
        %p663 = pneg %p426
        %p664 = pneg %p423
        %p665 = pneg %p452
        %p666 = pneg %p449
        %p667 = scmp.lt.s32.totalorder %s32, 1
        %s668 = scalar_select %p667, %s32, 1
        %s669 = smul.addr %s668, 2
        %s670 = smul.addr %s669, 8
        %s671 = scalar_lea.vmem %s16, %s670
        %p672 = scmp.lt.s32.totalorder %s32, 1
        %s673 = scalar_select %p672, %s32, 1
        %s674 = smul.addr %s673, 2
        %s675 = smul.addr %s674, 8
        %s676 = scalar_lea.vmem %s0, %s675
        %p677 = scmp.lt.s32.totalorder %s33, 1
        %s678 = scalar_select %p677, %s33, 1
        %s679 = smul.addr %s678, 2
        %s680 = smul.addr %s679, 8
        %s681 = scalar_lea.vmem %s1, %s680
        %p682 = scmp.lt.s32.totalorder %s33, 1
        %s683 = scalar_select %p682, %s33, 1
        %s684 = smul.addr %s683, 8
        %s685 = smul.addr %s684, 4
        %s686 = scalar_lea.vmem %s2, %s685
        %p687 = scmp.lt.s32.totalorder %s33, 1
        %s688 = scalar_select %p687, %s33, 1
        %s689 = smul.addr %s688, 8
        %s690 = smul.addr %s689, 4
        %s691 = scalar_lea.vmem %s3, %s690
        %p692 = scmp.lt.s32.totalorder %s33, 1
        %s693 = scalar_select %p692, %s33, 1
        %s694 = scalar_lea.vmem %s4, %s693
        %p695 = scmp.lt.s32.totalorder %s33, 1
        %s696 = scalar_select %p695, %s33, 1
        %s697 = smul.addr %s696, 4
        %s698 = smul.addr %s697, 4
        %s699 = scalar_lea.vmem %s9, %s698
        %p700 = scmp.lt.s32.totalorder %s33, 1
        %s701 = scalar_select %p700, %s33, 1
        %s702 = scalar_lea.vmem %s10, %s701
        %p703 = scmp.lt.s32.totalorder %s33, 1
        %s704 = scalar_select %p703, %s33, 1
        %s705 = smul.addr %s704, 4
        %s706 = smul.addr %s705, 4
        %s707 = scalar_lea.vmem %s11, %s706
        %p708 = scmp.lt.s32.totalorder %s33, 1
        %s709 = scalar_select %p708, %s33, 1
        %s710 = scalar_lea.vmem %s12, %s709
        %p711 = scmp.lt.s32.totalorder %s33, 1
        %s712 = scalar_select %p711, %s33, 1
        %s713 = smul.addr %s712, 4
        %s714 = smul.addr %s713, 4
        %s715 = scalar_lea.vmem %s13, %s714
        %p716 = scmp.lt.s32.totalorder %s33, 1
        %s717 = scalar_select %p716, %s33, 1
        %s718 = scalar_lea.vmem %s14, %s717
        %p719 = scmp.lt.s32.totalorder %s32, 1
        %s720 = scalar_select %p719, %s32, 1
        %s721 = smul.addr %s720, 2
        %s722 = smul.addr %s721, 8
        %s723 = scalar_lea.vmem %s16, %s722
        %p725 = scmp.eq.s32.totalorder %s33, 0
        // Predicated region
        $region89: #{llama_forward.2} parent=83 // pred_check
          %p726 = pneg %p725
        $region90: #{llama_forward.2} parent=83 // pred_check_branch
          %728 = sbr.rel (%p726) target = $region92
        $region91: #{llama_forward.2} parent=83 // pred_region
          %v729 = vld [vmem:[%s676] sm:$0xff]
          %v730 = vld [vmem:[%s676 + $0x8] sm:$0xff]
          %vm731 = vcmask 261120
          %732 = vst.msk [vmem:[#allocation2] sm:$0xff] %vm731, %v729
          %733 = vst.msk [vmem:[#allocation2 + $0x8] sm:$0xff] %vm731, %v730
        $region92: #{llama_forward.2} parent=83 // pred_fallthru
          _
        %v734 = vld [vmem:[#allocation2] sm:$0xff]
        %v735 = vld [vmem:[#allocation2 + $0x8] sm:$0xff]
        %v736 = vld [vmem:[%s681] sm:$0xff]
        %v737 = vld [vmem:[%s681 + $0x8] sm:$0xff]
        %v738 = vmul.f32 %v734, %v734
        %v739 = vmul.f32 %v735, %v735
        %vm740 = vcmask 261120
        %v741 = vsel %vm740, %v738, 0.0
        %v742 = vsel %vm740, %v739, 0.0
        %v743 = vadd.f32 %v741, %v742
        %744 = vadd.xlane.f32.xlu0 %v743
        %v745 = vpop.xlane.xlu0 %744
        %v746 = vrot.slane %v745, 4
        %v747 = vadd.f32 %v745, %v746
        %v748 = vrot.slane %v747, 2
        %v749 = vadd.f32 %v747, %v748
        %v750 = vrot.slane %v749, 1
        %v751 = vadd.f32 %v749, %v750
        %s752 = vtos %v751
        %v753 = vrcp.pop 512.0
        %s754 = vtos %v753
        %s755 = smul.f32 %s752, %s754
        %v756 = vstv %s755
        %v757 = vrsqrt.pop %v756
        %s758 = vtos %v757
        %v759 = vstv %s758
        %v760 = vmul.f32 %v734, %v759
        %v761 = vmul.f32 %v735, %v759
        %v762 = vmul.f32 %v736, %v760
        %v763 = vmul.f32 %v737, %v761
        %v764 = vpack.c.bf16 %v763, %v762
        %v765 = vld [vmem:[%s686] sm:$0xf]
        %v766 = vld [vmem:[%s686 + $0x4] sm:$0xf]
        %v767 = vld [vmem:[%s686 + $0x8] sm:$0xf]
        %v768 = vld [vmem:[%s686 + $0xc] sm:$0xf]
        %v769 = vld [vmem:[%s686 + $0x10] sm:$0xf]
        %v770 = vld [vmem:[%s686 + $0x14] sm:$0xf]
        %v771 = vld [vmem:[%s686 + $0x18] sm:$0xf]
        %v772 = vld [vmem:[%s686 + $0x1c] sm:$0xf]
        %v777 = vunpack.c.l.b16 %v765
        %v778 = vunpack.c.l.b16 %v766
        %v779 = vunpack.c.l.b16 %v767
        %v780 = vunpack.c.l.b16 %v768
        %v781 = vpack.c.b16 %v778, %v777
        %v782 = vpack.c.b16 %v780, %v779
        %v786 = vsel %vm740, %v764, 0
        %788 = vmatprep.subr.bf16.mxu0 0
        %789 = vmatpush1.bf16.msra.mxu0 %v781
        %790 = vmatprep.subr.bf16.mxu0 0
        %791 = vmatpush1.bf16.msra.mxu0 %v782
        %792 = vmatprep.subr.bf16.mxu0 0
        %793 = vmatpush1.bf16.msra.mxu0 0
        %794 = vmatprep.subr.bf16.mxu0 0
        %795 = vmatpush1.bf16.msra.mxu0 0
        %796 = vmatprep.subr.bf16.mxu0 0
        %797 = vmatpush1.bf16.msra.mxu0 0
        %798 = vmatprep.subr.bf16.mxu0 0
        %799 = vmatpush1.bf16.msra.mxu0 0
        %800 = vmatprep.subr.bf16.mxu0 0
        %801 = vmatpush1.bf16.msra.mxu0 0
        %802 = vmatprep.subr.bf16.mxu0 0
        %803 = vmatpush1.bf16.msra.mxu0 0
        %804 = vmatprep.subr.bf16.mxu0 0
        %805 = vmatpush1.bf16.msra.mxu0 0
        %806 = vmatprep.subr.bf16.mxu0 0
        %807 = vmatpush1.bf16.msra.mxu0 0
        %808 = vmatprep.subr.bf16.mxu0 0
        %809 = vmatpush1.bf16.msra.mxu0 0
        %810 = vmatprep.subr.bf16.mxu0 0
        %811 = vmatpush1.bf16.msra.mxu0 0
        %812 = vmatprep.subr.bf16.mxu0 0
        %813 = vmatpush1.bf16.msra.mxu0 0
        %814 = vmatprep.subr.bf16.mxu0 0
        %815 = vmatpush1.bf16.msra.mxu0 0
        %816 = vmatprep.subr.bf16.mxu0 0
        %817 = vmatpush1.bf16.msra.mxu0 0
        %818 = vmatprep.subr.bf16.mxu0 0
        %819 = vmatpush1.bf16.msra.mxu0 0
        %820 = vmatprep.mubr.bf16.mxu0 0
        %821 = vmatmul.mubr.bf16.gmra.mrb[0].mxu0 %v786
        %v822 = vpop.f32.mrb[0].mxu0
        %v823 = vadd.f32 0.0, %v822
        %v824 = vpop.f32.mrb[0].mxu0
        %v825 = vpop.f32.mrb[0].mxu0
        %v826 = vadd.f32 0.0, %v825
        %v827 = vpop.f32.mrb[0].mxu0
        %828 = vdwg.mxu0
        %v833 = vunpack.c.l.b16 %v769
        %v834 = vunpack.c.l.b16 %v770
        %v835 = vunpack.c.l.b16 %v771
        %v836 = vunpack.c.l.b16 %v772
        %v837 = vpack.c.b16 %v834, %v833
        %v838 = vpack.c.b16 %v836, %v835
        %841 = vmatprep.subr.bf16.mxu0 0
        %842 = vmatpush1.bf16.msra.mxu0 %v837
        %843 = vmatprep.subr.bf16.mxu0 0
        %844 = vmatpush1.bf16.msra.mxu0 %v838
        %845 = vmatprep.subr.bf16.mxu0 0
        %846 = vmatpush1.bf16.msra.mxu0 0
        %847 = vmatprep.subr.bf16.mxu0 0
        %848 = vmatpush1.bf16.msra.mxu0 0
        %849 = vmatprep.subr.bf16.mxu0 0
        %850 = vmatpush1.bf16.msra.mxu0 0
        %851 = vmatprep.subr.bf16.mxu0 0
        %852 = vmatpush1.bf16.msra.mxu0 0
        %853 = vmatprep.subr.bf16.mxu0 0
        %854 = vmatpush1.bf16.msra.mxu0 0
        %855 = vmatprep.subr.bf16.mxu0 0
        %856 = vmatpush1.bf16.msra.mxu0 0
        %857 = vmatprep.subr.bf16.mxu0 0
        %858 = vmatpush1.bf16.msra.mxu0 0
        %859 = vmatprep.subr.bf16.mxu0 0
        %860 = vmatpush1.bf16.msra.mxu0 0
        %861 = vmatprep.subr.bf16.mxu0 0
        %862 = vmatpush1.bf16.msra.mxu0 0
        %863 = vmatprep.subr.bf16.mxu0 0
        %864 = vmatpush1.bf16.msra.mxu0 0
        %865 = vmatprep.subr.bf16.mxu0 0
        %866 = vmatpush1.bf16.msra.mxu0 0
        %867 = vmatprep.subr.bf16.mxu0 0
        %868 = vmatpush1.bf16.msra.mxu0 0
        %869 = vmatprep.subr.bf16.mxu0 0
        %870 = vmatpush1.bf16.msra.mxu0 0
        %871 = vmatprep.subr.bf16.mxu0 0
        %872 = vmatpush1.bf16.msra.mxu0 0
        %873 = vmatprep.mubr.bf16.mxu0 0
        %874 = vmatmul.mubr.bf16.gmra.mrb[0].mxu0 %v786
        %v875 = vpop.f32.mrb[0].mxu0
        %v876 = vadd.f32 0.0, %v875
        %v877 = vpop.f32.mrb[0].mxu0
        %v878 = vpop.f32.mrb[0].mxu0
        %v879 = vadd.f32 0.0, %v878
        %v880 = vpop.f32.mrb[0].mxu0
        %881 = vdwg.mxu0
        %v882 = vpack.c.bf16 %v826, %v823
        %v883 = vpack.c.bf16 %v879, %v876
        %v884 = vld [vmem:[%s7] sm:$0xf]
        %v885 = vld [vmem:[%s7 + $0x4] sm:$0xf]
        %v886 = vld [vmem:[%s7 + $0x8] sm:$0xf]
        %v887 = vld [vmem:[%s7 + $0xc] sm:$0xf]
        %v888 = vld [vmem:[%s7 + $0x10] sm:$0xf]
        %v889 = vld [vmem:[%s7 + $0x14] sm:$0xf]
        %v890 = vld [vmem:[%s7 + $0x18] sm:$0xf]
        %v891 = vld [vmem:[%s7 + $0x1c] sm:$0xf]
        %v900 = vunpack.c.l.b16 %v884
        %v901 = vunpack.c.l.b16 %v885
        %v902 = vunpack.c.l.b16 %v886
        %v903 = vunpack.c.l.b16 %v887
        %v904 = vunpack.c.l.b16 %v888
        %v905 = vunpack.c.l.b16 %v889
        %v906 = vunpack.c.l.b16 %v890
        %v907 = vunpack.c.l.b16 %v891
        %v908 = vpack.c.b16 %v901, %v900
        %v909 = vpack.c.b16 %v903, %v902
        %v910 = vpack.c.b16 %v905, %v904
        %v911 = vpack.c.b16 %v907, %v906
        %vm916 = vcmask 523264
        %v918 = vsel %vm916, %v882, 0
        %920 = vmatprep.subr.bf16.mxu0 0
        %921 = vmatpush1.bf16.msra.mxu0 %v908
        %922 = vmatprep.subr.bf16.mxu0 0
        %923 = vmatpush1.bf16.msra.mxu0 %v909
        %924 = vmatprep.subr.bf16.mxu0 0
        %925 = vmatpush1.bf16.msra.mxu0 %v910
        %926 = vmatprep.subr.bf16.mxu0 0
        %927 = vmatpush1.bf16.msra.mxu0 %v911
        %928 = vmatprep.subr.bf16.mxu0 0
        %929 = vmatpush1.bf16.msra.mxu0 0
        %930 = vmatprep.subr.bf16.mxu0 0
        %931 = vmatpush1.bf16.msra.mxu0 0
        %932 = vmatprep.subr.bf16.mxu0 0
        %933 = vmatpush1.bf16.msra.mxu0 0
        %934 = vmatprep.subr.bf16.mxu0 0
        %935 = vmatpush1.bf16.msra.mxu0 0
        %936 = vmatprep.subr.bf16.mxu0 0
        %937 = vmatpush1.bf16.msra.mxu0 0
        %938 = vmatprep.subr.bf16.mxu0 0
        %939 = vmatpush1.bf16.msra.mxu0 0
        %940 = vmatprep.subr.bf16.mxu0 0
        %941 = vmatpush1.bf16.msra.mxu0 0
        %942 = vmatprep.subr.bf16.mxu0 0
        %943 = vmatpush1.bf16.msra.mxu0 0
        %944 = vmatprep.subr.bf16.mxu0 0
        %945 = vmatpush1.bf16.msra.mxu0 0
        %946 = vmatprep.subr.bf16.mxu0 0
        %947 = vmatpush1.bf16.msra.mxu0 0
        %948 = vmatprep.subr.bf16.mxu0 0
        %949 = vmatpush1.bf16.msra.mxu0 0
        %950 = vmatprep.subr.bf16.mxu0 0
        %951 = vmatpush1.bf16.msra.mxu0 0
        %952 = vmatprep.mubr.bf16.mxu0 0
        %953 = vmatmul.mubr.bf16.gmra.mrb[0].mxu0 %v918
        %v954 = vpop.f32.mrb[0].mxu0
        %v955 = vadd.f32 0.0, %v954
        %v956 = vpop.f32.mrb[0].mxu0
        %v957 = vpop.f32.mrb[0].mxu0
        %v958 = vadd.f32 0.0, %v957
        %v959 = vpop.f32.mrb[0].mxu0
        %960 = vdwg.mxu0
        %v962 = vsel %vm916, %v883, 0
        %964 = vmatprep.subr.bf16.mxu0 0
        %965 = vmatpush1.bf16.msra.mxu0 %v908
        %966 = vmatprep.subr.bf16.mxu0 0
        %967 = vmatpush1.bf16.msra.mxu0 %v909
        %968 = vmatprep.subr.bf16.mxu0 0
        %969 = vmatpush1.bf16.msra.mxu0 %v910
        %970 = vmatprep.subr.bf16.mxu0 0
        %971 = vmatpush1.bf16.msra.mxu0 %v911
        %972 = vmatprep.subr.bf16.mxu0 0
        %973 = vmatpush1.bf16.msra.mxu0 0
        %974 = vmatprep.subr.bf16.mxu0 0
        %975 = vmatpush1.bf16.msra.mxu0 0
        %976 = vmatprep.subr.bf16.mxu0 0
        %977 = vmatpush1.bf16.msra.mxu0 0
        %978 = vmatprep.subr.bf16.mxu0 0
        %979 = vmatpush1.bf16.msra.mxu0 0
        %980 = vmatprep.subr.bf16.mxu0 0
        %981 = vmatpush1.bf16.msra.mxu0 0
        %982 = vmatprep.subr.bf16.mxu0 0
        %983 = vmatpush1.bf16.msra.mxu0 0
        %984 = vmatprep.subr.bf16.mxu0 0
        %985 = vmatpush1.bf16.msra.mxu0 0
        %986 = vmatprep.subr.bf16.mxu0 0
        %987 = vmatpush1.bf16.msra.mxu0 0
        %988 = vmatprep.subr.bf16.mxu0 0
        %989 = vmatpush1.bf16.msra.mxu0 0
        %990 = vmatprep.subr.bf16.mxu0 0
        %991 = vmatpush1.bf16.msra.mxu0 0
        %992 = vmatprep.subr.bf16.mxu0 0
        %993 = vmatpush1.bf16.msra.mxu0 0
        %994 = vmatprep.subr.bf16.mxu0 0
        %995 = vmatpush1.bf16.msra.mxu0 0
        %996 = vmatprep.mubr.bf16.mxu0 0
        %997 = vmatmul.mubr.bf16.gmra.mrb[0].mxu0 %v962
        %v998 = vpop.f32.mrb[0].mxu0
        %v999 = vadd.f32 0.0, %v998
        %v1000 = vpop.f32.mrb[0].mxu0
        %v1001 = vpop.f32.mrb[0].mxu0
        %v1002 = vadd.f32 0.0, %v1001
        %v1003 = vpop.f32.mrb[0].mxu0
        %1004 = vdwg.mxu0
        %v1005 = vld [vmem:[%s5] sm:$0xff]
        %v1006 = vld [vmem:[%s5 + $0x8] sm:$0xff]
        %v1007 = vunpack.c.l.bf16 %v882
        %v1008 = vunpack.c.h.bf16 %v882
        %v1009 = vunpack.c.l.bf16 %v883
        %v1010 = vunpack.c.h.bf16 %v883
        %v1011 = vmul.f32 %v1007, %v1005
        %v1012 = vmul.f32 %v1008, %v1006
        %v1013 = vmul.f32 %v1009, %v1005
        %v1014 = vmul.f32 %v1010, %v1006
        %v1015 = vld [vmem:[%s6] sm:$0xff]
        %v1016 = vld [vmem:[%s6 + $0x8] sm:$0xff]
        %v1017 = vmul.f32 %v955, %v1015
        %v1018 = vmul.f32 %v958, %v1016
        %v1019 = vmul.f32 %v999, %v1015
        %v1020 = vmul.f32 %v1002, %v1016
        %v1021 = vadd.f32 %v1011, %v1017
        %v1022 = vadd.f32 %v1012, %v1018
        %v1023 = vadd.f32 %v1013, %v1019
        %v1024 = vadd.f32 %v1014, %v1020
        %v1025 = vpack.c.bf16 %v1022, %v1021
        %v1026 = vpack.c.bf16 %v1024, %v1023
        %v1027 = vld [vmem:[%s8] sm:$0xff]
        %v1028 = vld [vmem:[%s8 + $0x8] sm:$0xff]
        %1030 = vrot.lane.b32.xlu0 %v1025, 96
        %v1031 = vpop.permute.xlu0 %1030
        %v1033 = vsel %vm740, %v1025, 0
        %v1036 = vsel %vm740, %v1031, 0
        %1038 = vmatprep.subr.bf16.mxu0 0
        %1039 = vmatpush1.bf16.xpose.msra.mxu0 %v1036
        %1040 = vmatprep.subr.bf16.mxu0 0
        %1041 = vmatpush1.bf16.xpose.msra.mxu0 0
        %1042 = vmatprep.subr.bf16.mxu0 0
        %1043 = vmatpush1.bf16.xpose.msra.mxu0 0
        %1044 = vmatprep.subr.bf16.mxu0 0
        %1045 = vmatpush1.bf16.xpose.msra.mxu0 0
        %1046 = vmatprep.subr.bf16.mxu0 0
        %1047 = vmatpush1.bf16.xpose.msra.mxu0 0
        %1048 = vmatprep.subr.bf16.mxu0 0
        %1049 = vmatpush1.bf16.xpose.msra.mxu0 0
        %1050 = vmatprep.subr.bf16.mxu0 0
        %1051 = vmatpush1.bf16.xpose.msra.mxu0 0
        %1052 = vmatprep.subr.bf16.mxu0 0
        %1053 = vmatpush1.bf16.xpose.msra.mxu0 0
        %1054 = vmatprep.subr.bf16.mxu0 0
        %1055 = vmatpush1.bf16.xpose.msra.mxu0 0
        %1056 = vmatprep.subr.bf16.mxu0 0
        %1057 = vmatpush1.bf16.xpose.msra.mxu0 0
        %1058 = vmatprep.subr.bf16.mxu0 0
        %1059 = vmatpush1.bf16.xpose.msra.mxu0 0
        %1060 = vmatprep.subr.bf16.mxu0 0
        %1061 = vmatpush1.bf16.xpose.msra.mxu0 0
        %1062 = vmatprep.subr.bf16.mxu0 0
        %1063 = vmatpush1.bf16.xpose.msra.mxu0 0
        %1064 = vmatprep.subr.bf16.mxu0 0
        %1065 = vmatpush1.bf16.xpose.msra.mxu0 0
        %1066 = vmatprep.subr.bf16.mxu0 0
        %1067 = vmatpush1.bf16.xpose.msra.mxu0 0
        %1068 = vmatprep.subr.bf16.mxu0 0
        %1069 = vmatpush1.bf16.xpose.msra.mxu0 0
        %1070 = vmatprep.mubr.bf16.mxu0 0
        %1071 = vmatmul.mubr.bf16.gmra.mrb[0].mxu0 %v1033
        %v1072 = vpop.f32.mrb[0].mxu0
        %v1073 = vadd.f32 %v1027, %v1072
        %v1074 = vpop.f32.mrb[0].mxu0
        %v1075 = vpop.f32.mrb[0].mxu0
        %v1076 = vadd.f32 %v1028, %v1075
        %v1077 = vpop.f32.mrb[0].mxu0
        %1078 = vdwg.mxu0
        %1080 = vrot.lane.b32.xlu0 %v1026, 96
        %v1081 = vpop.permute.xlu0 %1080
        %v1083 = vsel %vm740, %v1026, 0
        %v1086 = vsel %vm740, %v1081, 0
        %1088 = vmatprep.subr.bf16.mxu0 0
        %1089 = vmatpush1.bf16.xpose.msra.mxu0 %v1086
        %1090 = vmatprep.subr.bf16.mxu0 0
        %1091 = vmatpush1.bf16.xpose.msra.mxu0 0
        %1092 = vmatprep.subr.bf16.mxu0 0
        %1093 = vmatpush1.bf16.xpose.msra.mxu0 0
        %1094 = vmatprep.subr.bf16.mxu0 0
        %1095 = vmatpush1.bf16.xpose.msra.mxu0 0
        %1096 = vmatprep.subr.bf16.mxu0 0
        %1097 = vmatpush1.bf16.xpose.msra.mxu0 0
        %1098 = vmatprep.subr.bf16.mxu0 0
        %1099 = vmatpush1.bf16.xpose.msra.mxu0 0
        %1100 = vmatprep.subr.bf16.mxu0 0
        %1101 = vmatpush1.bf16.xpose.msra.mxu0 0
        %1102 = vmatprep.subr.bf16.mxu0 0
        %1103 = vmatpush1.bf16.xpose.msra.mxu0 0
        %1104 = vmatprep.subr.bf16.mxu0 0
        %1105 = vmatpush1.bf16.xpose.msra.mxu0 0
        %1106 = vmatprep.subr.bf16.mxu0 0
        %1107 = vmatpush1.bf16.xpose.msra.mxu0 0
        %1108 = vmatprep.subr.bf16.mxu0 0
        %1109 = vmatpush1.bf16.xpose.msra.mxu0 0
        %1110 = vmatprep.subr.bf16.mxu0 0
        %1111 = vmatpush1.bf16.xpose.msra.mxu0 0
        %1112 = vmatprep.subr.bf16.mxu0 0
        %1113 = vmatpush1.bf16.xpose.msra.mxu0 0
        %1114 = vmatprep.subr.bf16.mxu0 0
        %1115 = vmatpush1.bf16.xpose.msra.mxu0 0
        %1116 = vmatprep.subr.bf16.mxu0 0
        %1117 = vmatpush1.bf16.xpose.msra.mxu0 0
        %1118 = vmatprep.subr.bf16.mxu0 0
        %1119 = vmatpush1.bf16.xpose.msra.mxu0 0
        %1120 = vmatprep.mubr.bf16.mxu0 0
        %1121 = vmatmul.mubr.bf16.gmra.mrb[0].mxu0 %v1083
        %v1122 = vpop.f32.mrb[0].mxu0
        %v1123 = vadd.f32 %v1027, %v1122
        %v1124 = vpop.f32.mrb[0].mxu0
        %v1125 = vpop.f32.mrb[0].mxu0
        %v1126 = vadd.f32 %v1028, %v1125
        %v1127 = vpop.f32.mrb[0].mxu0
        %1128 = vdwg.mxu0
        %vm1129 = vcmask 130048
        %v1130 = vsel %vm1129, %v1073, -inf
        %1131 = vmax.xlane.f32.xlu0 %v1130
        %v1132 = vpop.xlane.xlu0 %1131
        %v1133 = vsel %vm1129, %v1076, -inf
        %1134 = vmax.xlane.f32.xlu0 %v1133
        %v1135 = vpop.xlane.xlu0 %1134
        %v1136 = vsel %vm1129, %v1123, -inf
        %1137 = vmax.xlane.f32.xlu0 %v1136
        %v1138 = vpop.xlane.xlu0 %1137
        %v1139 = vsel %vm1129, %v1126, -inf
        %1140 = vmax.xlane.f32.xlu0 %v1139
        %v1141 = vpop.xlane.xlu0 %1140
        %v1142 = vsub.f32 %v1073, %v1132
        %v1143 = vsub.f32 %v1076, %v1135
        %v1144 = vsub.f32 %v1123, %v1138
        %v1145 = vsub.f32 %v1126, %v1141
        %v1146 = vmul.f32 %v1142, 1.442695
        %v1147 = vpow.pop %v1146
        %v1148 = vmul.f32 %v1143, 1.442695
        %v1149 = vpow.pop %v1148
        %v1150 = vmul.f32 %v1144, 1.442695
        %v1151 = vpow.pop %v1150
        %v1152 = vmul.f32 %v1145, 1.442695
        %v1153 = vpow.pop %v1152
        %v1154 = vsel %vm1129, %v1147, 0.0
        %1155 = vadd.xlane.f32.xlu0 %v1154
        %v1156 = vpop.xlane.xlu0 %1155
        %v1157 = vsel %vm1129, %v1149, 0.0
        %1158 = vadd.xlane.f32.xlu0 %v1157
        %v1159 = vpop.xlane.xlu0 %1158
        %v1160 = vsel %vm1129, %v1151, 0.0
        %1161 = vadd.xlane.f32.xlu0 %v1160
        %v1162 = vpop.xlane.xlu0 %1161
        %v1163 = vsel %vm1129, %v1153, 0.0
        %1164 = vadd.xlane.f32.xlu0 %v1163
        %v1165 = vpop.xlane.xlu0 %1164
        %v1166 = vrcp.pop %v1156
        %v1167 = vrcp.pop %v1159
        %v1168 = vrcp.pop %v1162
        %v1169 = vrcp.pop %v1165
        %v1170 = vmul.f32 %v1147, %v1166
        %v1171 = vmul.f32 %v1149, %v1167
        %v1172 = vmul.f32 %v1151, %v1168
        %v1173 = vmul.f32 %v1153, %v1169
        %v1174 = vpack.c.bf16 %v1171, %v1170
        %v1175 = vpack.c.bf16 %v1173, %v1172
        %1177 = vrot.lane.b32.xlu0 %v882, 64
        %v1178 = vpop.permute.xlu0 %1177
        %v1181 = vsel %vm1129, %v1174, 0
        %1183 = vmatprep.subr.bf16.mxu0 0
        %1184 = vmatpush1.bf16.msra.mxu0 %v1178
        %1185 = vmatprep.subr.bf16.mxu0 0
        %1186 = vmatpush1.bf16.msra.mxu0 0
        %1187 = vmatprep.subr.bf16.mxu0 0
        %1188 = vmatpush1.bf16.msra.mxu0 0
        %1189 = vmatprep.subr.bf16.mxu0 0
        %1190 = vmatpush1.bf16.msra.mxu0 0
        %1191 = vmatprep.subr.bf16.mxu0 0
        %1192 = vmatpush1.bf16.msra.mxu0 0
        %1193 = vmatprep.subr.bf16.mxu0 0
        %1194 = vmatpush1.bf16.msra.mxu0 0
        %1195 = vmatprep.subr.bf16.mxu0 0
        %1196 = vmatpush1.bf16.msra.mxu0 0
        %1197 = vmatprep.subr.bf16.mxu0 0
        %1198 = vmatpush1.bf16.msra.mxu0 0
        %1199 = vmatprep.subr.bf16.mxu0 0
        %1200 = vmatpush1.bf16.msra.mxu0 0
        %1201 = vmatprep.subr.bf16.mxu0 0
        %1202 = vmatpush1.bf16.msra.mxu0 0
        %1203 = vmatprep.subr.bf16.mxu0 0
        %1204 = vmatpush1.bf16.msra.mxu0 0
        %1205 = vmatprep.subr.bf16.mxu0 0
        %1206 = vmatpush1.bf16.msra.mxu0 0
        %1207 = vmatprep.subr.bf16.mxu0 0
        %1208 = vmatpush1.bf16.msra.mxu0 0
        %1209 = vmatprep.subr.bf16.mxu0 0
        %1210 = vmatpush1.bf16.msra.mxu0 0
        %1211 = vmatprep.subr.bf16.mxu0 0
        %1212 = vmatpush1.bf16.msra.mxu0 0
        %1213 = vmatprep.subr.bf16.mxu0 0
        %1214 = vmatpush1.bf16.msra.mxu0 0
        %1215 = vmatprep.mubr.bf16.mxu0 0
        %1216 = vmatmul.mubr.bf16.gmra.mrb[0].mxu0 %v1181
        %v1217 = vpop.f32.mrb[0].mxu0
        %v1218 = vadd.f32 0.0, %v1217
        %v1219 = vpop.f32.mrb[0].mxu0
        %v1220 = vpop.f32.mrb[0].mxu0
        %v1221 = vadd.f32 0.0, %v1220
        %v1222 = vpop.f32.mrb[0].mxu0
        %1223 = vdwg.mxu0
        %1225 = vrot.lane.b32.xlu0 %v883, 64
        %v1226 = vpop.permute.xlu0 %1225
        %v1229 = vsel %vm1129, %v1175, 0
        %1231 = vmatprep.subr.bf16.mxu0 0
        %1232 = vmatpush1.bf16.msra.mxu0 %v1226
        %1233 = vmatprep.subr.bf16.mxu0 0
        %1234 = vmatpush1.bf16.msra.mxu0 0
        %1235 = vmatprep.subr.bf16.mxu0 0
        %1236 = vmatpush1.bf16.msra.mxu0 0
        %1237 = vmatprep.subr.bf16.mxu0 0
        %1238 = vmatpush1.bf16.msra.mxu0 0
        %1239 = vmatprep.subr.bf16.mxu0 0
        %1240 = vmatpush1.bf16.msra.mxu0 0
        %1241 = vmatprep.subr.bf16.mxu0 0
        %1242 = vmatpush1.bf16.msra.mxu0 0
        %1243 = vmatprep.subr.bf16.mxu0 0
        %1244 = vmatpush1.bf16.msra.mxu0 0
        %1245 = vmatprep.subr.bf16.mxu0 0
        %1246 = vmatpush1.bf16.msra.mxu0 0
        %1247 = vmatprep.subr.bf16.mxu0 0
        %1248 = vmatpush1.bf16.msra.mxu0 0
        %1249 = vmatprep.subr.bf16.mxu0 0
        %1250 = vmatpush1.bf16.msra.mxu0 0
        %1251 = vmatprep.subr.bf16.mxu0 0
        %1252 = vmatpush1.bf16.msra.mxu0 0
        %1253 = vmatprep.subr.bf16.mxu0 0
        %1254 = vmatpush1.bf16.msra.mxu0 0
        %1255 = vmatprep.subr.bf16.mxu0 0
        %1256 = vmatpush1.bf16.msra.mxu0 0
        %1257 = vmatprep.subr.bf16.mxu0 0
        %1258 = vmatpush1.bf16.msra.mxu0 0
        %1259 = vmatprep.subr.bf16.mxu0 0
        %1260 = vmatpush1.bf16.msra.mxu0 0
        %1261 = vmatprep.subr.bf16.mxu0 0
        %1262 = vmatpush1.bf16.msra.mxu0 0
        %1263 = vmatprep.mubr.bf16.mxu0 0
        %1264 = vmatmul.mubr.bf16.gmra.mrb[0].mxu0 %v1229
        %v1265 = vpop.f32.mrb[0].mxu0
        %v1266 = vadd.f32 0.0, %v1265
        %v1267 = vpop.f32.mrb[0].mxu0
        %v1268 = vpop.f32.mrb[0].mxu0
        %v1269 = vadd.f32 0.0, %v1268
        %v1270 = vpop.f32.mrb[0].mxu0
        %1271 = vdwg.mxu0
        %v1272 = vpack.c.bf16 %v1221, %v1218
        %v1273 = vpack.c.bf16 %v1269, %v1266
        %v1274 = vld [vmem:[%s691] sm:$0xf]
        %v1275 = vld [vmem:[%s691 + $0x4] sm:$0xf]
        %v1276 = vld [vmem:[%s691 + $0x8] sm:$0xf]
        %v1277 = vld [vmem:[%s691 + $0xc] sm:$0xf]
        %v1278 = vld [vmem:[%s691 + $0x10] sm:$0xf]
        %v1279 = vld [vmem:[%s691 + $0x14] sm:$0xf]
        %v1280 = vld [vmem:[%s691 + $0x18] sm:$0xf]
        %v1281 = vld [vmem:[%s691 + $0x1c] sm:$0xf]
        %v1286 = vunpack.c.l.b16 %v1274
        %v1287 = vunpack.c.l.b16 %v1275
        %v1288 = vunpack.c.l.b16 %v1276
        %v1289 = vunpack.c.l.b16 %v1277
        %v1290 = vpack.c.b16 %v1287, %v1286
        %v1291 = vpack.c.b16 %v1289, %v1288
        %v1295 = vsel %vm740, %v1272, 0
        %1297 = vmatprep.subr.bf16.mxu0 0
        %1298 = vmatpush1.bf16.msra.mxu0 %v1290
        %1299 = vmatprep.subr.bf16.mxu0 0
        %1300 = vmatpush1.bf16.msra.mxu0 %v1291
        %1301 = vmatprep.subr.bf16.mxu0 0
        %1302 = vmatpush1.bf16.msra.mxu0 0
        %1303 = vmatprep.subr.bf16.mxu0 0
        %1304 = vmatpush1.bf16.msra.mxu0 0
        %1305 = vmatprep.subr.bf16.mxu0 0
        %1306 = vmatpush1.bf16.msra.mxu0 0
        %1307 = vmatprep.subr.bf16.mxu0 0
        %1308 = vmatpush1.bf16.msra.mxu0 0
        %1309 = vmatprep.subr.bf16.mxu0 0
        %1310 = vmatpush1.bf16.msra.mxu0 0
        %1311 = vmatprep.subr.bf16.mxu0 0
        %1312 = vmatpush1.bf16.msra.mxu0 0
        %1313 = vmatprep.subr.bf16.mxu0 0
        %1314 = vmatpush1.bf16.msra.mxu0 0
        %1315 = vmatprep.subr.bf16.mxu0 0
        %1316 = vmatpush1.bf16.msra.mxu0 0
        %1317 = vmatprep.subr.bf16.mxu0 0
        %1318 = vmatpush1.bf16.msra.mxu0 0
        %1319 = vmatprep.subr.bf16.mxu0 0
        %1320 = vmatpush1.bf16.msra.mxu0 0
        %1321 = vmatprep.subr.bf16.mxu0 0
        %1322 = vmatpush1.bf16.msra.mxu0 0
        %1323 = vmatprep.subr.bf16.mxu0 0
        %1324 = vmatpush1.bf16.msra.mxu0 0
        %1325 = vmatprep.subr.bf16.mxu0 0
        %1326 = vmatpush1.bf16.msra.mxu0 0
        %1327 = vmatprep.subr.bf16.mxu0 0
        %1328 = vmatpush1.bf16.msra.mxu0 0
        %1329 = vmatprep.mubr.bf16.mxu0 0
        %1330 = vmatmul.mubr.bf16.gmra.mrb[0].mxu0 %v1295
        %v1331 = vpop.f32.mrb[0].mxu0
        %v1332 = vadd.f32 0.0, %v1331
        %v1333 = vpop.f32.mrb[0].mxu0
        %v1334 = vpop.f32.mrb[0].mxu0
        %v1335 = vadd.f32 0.0, %v1334
        %v1336 = vpop.f32.mrb[0].mxu0
        %1337 = vdwg.mxu0
        %v1342 = vunpack.c.l.b16 %v1278
        %v1343 = vunpack.c.l.b16 %v1279
        %v1344 = vunpack.c.l.b16 %v1280
        %v1345 = vunpack.c.l.b16 %v1281
        %v1346 = vpack.c.b16 %v1343, %v1342
        %v1347 = vpack.c.b16 %v1345, %v1344
        %v1351 = vsel %vm740, %v1273, 0
        %1353 = vmatprep.subr.bf16.mxu0 0
        %1354 = vmatpush1.bf16.msra.mxu0 %v1346
        %1355 = vmatprep.subr.bf16.mxu0 0
        %1356 = vmatpush1.bf16.msra.mxu0 %v1347
        %1357 = vmatprep.subr.bf16.mxu0 0
        %1358 = vmatpush1.bf16.msra.mxu0 0
        %1359 = vmatprep.subr.bf16.mxu0 0
        %1360 = vmatpush1.bf16.msra.mxu0 0
        %1361 = vmatprep.subr.bf16.mxu0 0
        %1362 = vmatpush1.bf16.msra.mxu0 0
        %1363 = vmatprep.subr.bf16.mxu0 0
        %1364 = vmatpush1.bf16.msra.mxu0 0
        %1365 = vmatprep.subr.bf16.mxu0 0
        %1366 = vmatpush1.bf16.msra.mxu0 0
        %1367 = vmatprep.subr.bf16.mxu0 0
        %1368 = vmatpush1.bf16.msra.mxu0 0
        %1369 = vmatprep.subr.bf16.mxu0 0
        %1370 = vmatpush1.bf16.msra.mxu0 0
        %1371 = vmatprep.subr.bf16.mxu0 0
        %1372 = vmatpush1.bf16.msra.mxu0 0
        %1373 = vmatprep.subr.bf16.mxu0 0
        %1374 = vmatpush1.bf16.msra.mxu0 0
        %1375 = vmatprep.subr.bf16.mxu0 0
        %1376 = vmatpush1.bf16.msra.mxu0 0
        %1377 = vmatprep.subr.bf16.mxu0 0
        %1378 = vmatpush1.bf16.msra.mxu0 0
        %1379 = vmatprep.subr.bf16.mxu0 0
        %1380 = vmatpush1.bf16.msra.mxu0 0
        %1381 = vmatprep.subr.bf16.mxu0 0
        %1382 = vmatpush1.bf16.msra.mxu0 0
        %1383 = vmatprep.subr.bf16.mxu0 0
        %1384 = vmatpush1.bf16.msra.mxu0 0
        %1385 = vmatprep.mubr.bf16.mxu0 0
        %1386 = vmatmul.mubr.bf16.gmra.mrb[0].mxu0 %v1351
        %v1387 = vpop.f32.mrb[0].mxu0
        %v1388 = vadd.f32 0.0, %v1387
        %v1389 = vpop.f32.mrb[0].mxu0
        %v1390 = vpop.f32.mrb[0].mxu0
        %v1391 = vadd.f32 0.0, %v1390
        %v1392 = vpop.f32.mrb[0].mxu0
        %1393 = vdwg.mxu0
        %v1394 = vsel %vm740, %v1332, 0.0
        %v1395 = vsel %vm740, %v1388, 0.0
        %v1396 = vadd.f32 %v1394, %v1395
        %v1397 = vsel %vm740, %v1335, 0.0
        %v1398 = vsel %vm740, %v1391, 0.0
        %v1399 = vadd.f32 %v1397, %v1398
        %v1400 = vld [vmem:[%s694] sm:$0x1]
        %v1402 = vlaneseq
        %v1403 = vshrl.u32 %v1402, 7
        %v1404 = vsub.s32 0, %v1403
        %v1405 = vrot.slane %v1400, %v1404
        %v1407 = vadd.f32 %v1396, %v1405
        %v1408 = vadd.f32 %v1399, %v1405
        %v1409 = vadd.f32 %v762, %v1407
        %v1410 = vadd.f32 %v763, %v1408
        %v1411 = vmul.f32 %v1409, %v1409
        %v1412 = vmul.f32 %v1410, %v1410
        %v1413 = vsel %vm740, %v1411, 0.0
        %v1414 = vsel %vm740, %v1412, 0.0
        %v1415 = vadd.f32 %v1413, %v1414
        %1416 = vadd.xlane.f32.xlu0 %v1415
        %v1417 = vpop.xlane.xlu0 %1416
        %v1418 = vrot.slane %v1417, 4
        %v1419 = vadd.f32 %v1417, %v1418
        %v1420 = vrot.slane %v1419, 2
        %v1421 = vadd.f32 %v1419, %v1420
        %v1422 = vrot.slane %v1421, 1
        %v1423 = vadd.f32 %v1421, %v1422
        %s1424 = vtos %v1423
        %v1425 = vrcp.pop 512.0
        %s1426 = vtos %v1425
        %s1427 = smul.f32 %s1424, %s1426
        %v1428 = vstv %s1427
        %v1429 = vrsqrt.pop %v1428
        %s1430 = vtos %v1429
        %v1431 = vstv %s1430
        %v1432 = vmul.f32 %v1409, %v1431
        %v1433 = vmul.f32 %v1410, %v1431
        %v1434 = vmul.f32 %v736, %v1432
        %v1435 = vmul.f32 %v737, %v1433
        %v1436 = vpack.c.bf16 %v1435, %v1434
        %v1437 = vld [vmem:[%s699] sm:$0xf]
        %v1438 = vld [vmem:[%s699 + $0x4] sm:$0xf]
        %v1439 = vld [vmem:[%s699 + $0x8] sm:$0xf]
        %v1440 = vld [vmem:[%s699 + $0xc] sm:$0xf]
        %v1441 = vld [vmem:[%s702] sm:$0x1]
        %v1443 = vlaneseq
        %v1444 = vshrl.u32 %v1443, 7
        %v1445 = vsub.s32 0, %v1444
        %v1446 = vrot.slane %v1441, %v1445
        %v1452 = vunpack.c.l.b16 %v1437
        %v1453 = vunpack.c.l.b16 %v1438
        %v1454 = vunpack.c.l.b16 %v1439
        %v1455 = vunpack.c.l.b16 %v1440
        %v1456 = vpack.c.b16 %v1453, %v1452
        %v1457 = vpack.c.b16 %v1455, %v1454
        %v1461 = vsel %vm740, %v1436, 0
        %1463 = vmatprep.subr.bf16.mxu0 0
        %1464 = vmatpush1.bf16.msra.mxu0 %v1456
        %1465 = vmatprep.subr.bf16.mxu0 0
        %1466 = vmatpush1.bf16.msra.mxu0 %v1457
        %1467 = vmatprep.subr.bf16.mxu0 0
        %1468 = vmatpush1.bf16.msra.mxu0 0
        %1469 = vmatprep.subr.bf16.mxu0 0
        %1470 = vmatpush1.bf16.msra.mxu0 0
        %1471 = vmatprep.subr.bf16.mxu0 0
        %1472 = vmatpush1.bf16.msra.mxu0 0
        %1473 = vmatprep.subr.bf16.mxu0 0
        %1474 = vmatpush1.bf16.msra.mxu0 0
        %1475 = vmatprep.subr.bf16.mxu0 0
        %1476 = vmatpush1.bf16.msra.mxu0 0
        %1477 = vmatprep.subr.bf16.mxu0 0
        %1478 = vmatpush1.bf16.msra.mxu0 0
        %1479 = vmatprep.subr.bf16.mxu0 0
        %1480 = vmatpush1.bf16.msra.mxu0 0
        %1481 = vmatprep.subr.bf16.mxu0 0
        %1482 = vmatpush1.bf16.msra.mxu0 0
        %1483 = vmatprep.subr.bf16.mxu0 0
        %1484 = vmatpush1.bf16.msra.mxu0 0
        %1485 = vmatprep.subr.bf16.mxu0 0
        %1486 = vmatpush1.bf16.msra.mxu0 0
        %1487 = vmatprep.subr.bf16.mxu0 0
        %1488 = vmatpush1.bf16.msra.mxu0 0
        %1489 = vmatprep.subr.bf16.mxu0 0
        %1490 = vmatpush1.bf16.msra.mxu0 0
        %1491 = vmatprep.subr.bf16.mxu0 0
        %1492 = vmatpush1.bf16.msra.mxu0 0
        %1493 = vmatprep.subr.bf16.mxu0 0
        %1494 = vmatpush1.bf16.msra.mxu0 0
        %1495 = vmatprep.mubr.bf16.mxu0 0
        %1496 = vmatmul.mubr.bf16.gmra.mrb[0].mxu0 %v1461
        %v1497 = vpop.f32.mrb[0].mxu0
        %v1498 = vadd.f32 %v1446, %v1497
        %v1499 = vpop.f32.mrb[0].mxu0
        %v1500 = vpop.f32.mrb[0].mxu0
        %v1501 = vadd.f32 %v1446, %v1500
        %v1502 = vpop.f32.mrb[0].mxu0
        %1503 = vdwg.mxu0
        %v1504 = vpack.c.bf16 %v1501, %v1498
        %s1505 = sld [smem:[#allocation3 + %s33]]
        %v1506 = vld [vmem:[%s707] sm:$0xf]
        %v1507 = vld [vmem:[%s707 + $0x4] sm:$0xf]
        %v1508 = vld [vmem:[%s707 + $0x8] sm:$0xf]
        %v1509 = vld [vmem:[%s707 + $0xc] sm:$0xf]
        %v1510 = vld [vmem:[%s710] sm:$0x1]
        %v1512 = vlaneseq
        %v1513 = vshrl.u32 %v1512, 7
        %v1514 = vsub.s32 0, %v1513
        %v1515 = vrot.slane %v1510, %v1514
        %v1521 = vunpack.c.l.b16 %v1506
        %v1522 = vunpack.c.l.b16 %v1507
        %v1523 = vunpack.c.l.b16 %v1508
        %v1524 = vunpack.c.l.b16 %v1509
        %v1525 = vpack.c.b16 %v1522, %v1521
        %v1526 = vpack.c.b16 %v1524, %v1523
        %v1530 = vsel %vm740, %v1504, 0
        %1532 = vmatprep.subr.bf16.mxu0 0
        %1533 = vmatpush1.bf16.msra.mxu0 %v1525
        %1534 = vmatprep.subr.bf16.mxu0 0
        %1535 = vmatpush1.bf16.msra.mxu0 %v1526
        %1536 = vmatprep.subr.bf16.mxu0 0
        %1537 = vmatpush1.bf16.msra.mxu0 0
        %1538 = vmatprep.subr.bf16.mxu0 0
        %1539 = vmatpush1.bf16.msra.mxu0 0
        %1540 = vmatprep.subr.bf16.mxu0 0
        %1541 = vmatpush1.bf16.msra.mxu0 0
        %1542 = vmatprep.subr.bf16.mxu0 0
        %1543 = vmatpush1.bf16.msra.mxu0 0
        %1544 = vmatprep.subr.bf16.mxu0 0
        %1545 = vmatpush1.bf16.msra.mxu0 0
        %1546 = vmatprep.subr.bf16.mxu0 0
        %1547 = vmatpush1.bf16.msra.mxu0 0
        %1548 = vmatprep.subr.bf16.mxu0 0
        %1549 = vmatpush1.bf16.msra.mxu0 0
        %1550 = vmatprep.subr.bf16.mxu0 0
        %1551 = vmatpush1.bf16.msra.mxu0 0
        %1552 = vmatprep.subr.bf16.mxu0 0
        %1553 = vmatpush1.bf16.msra.mxu0 0
        %1554 = vmatprep.subr.bf16.mxu0 0
        %1555 = vmatpush1.bf16.msra.mxu0 0
        %1556 = vmatprep.subr.bf16.mxu0 0
        %1557 = vmatpush1.bf16.msra.mxu0 0
        %1558 = vmatprep.subr.bf16.mxu0 0
        %1559 = vmatpush1.bf16.msra.mxu0 0
        %1560 = vmatprep.subr.bf16.mxu0 0
        %1561 = vmatpush1.bf16.msra.mxu0 0
        %1562 = vmatprep.subr.bf16.mxu0 0
        %1563 = vmatpush1.bf16.msra.mxu0 0
        %1564 = vmatprep.mubr.bf16.mxu0 0
        %1565 = vmatmul.mubr.bf16.gmra.mrb[0].mxu0 %v1530
        %v1566 = vpop.f32.mrb[0].mxu0
        %v1567 = vadd.f32 %v1515, %v1566
        %v1568 = vpop.f32.mrb[0].mxu0
        %v1569 = vpop.f32.mrb[0].mxu0
        %v1570 = vadd.f32 %v1515, %v1569
        %v1571 = vpop.f32.mrb[0].mxu0
        %1572 = vdwg.mxu0
        %v1573 = vld [vmem:[%s715] sm:$0xf]
        %v1574 = vld [vmem:[%s715 + $0x4] sm:$0xf]
        %v1575 = vld [vmem:[%s715 + $0x8] sm:$0xf]
        %v1576 = vld [vmem:[%s715 + $0xc] sm:$0xf]
        %v1577 = vld [vmem:[%s718] sm:$0x1]
        %v1579 = vlaneseq
        %v1580 = vshrl.u32 %v1579, 7
        %v1581 = vsub.s32 0, %v1580
        %v1582 = vrot.slane %v1577, %v1581
        %v1588 = vunpack.c.l.b16 %v1573
        %v1589 = vunpack.c.l.b16 %v1574
        %v1590 = vunpack.c.l.b16 %v1575
        %v1591 = vunpack.c.l.b16 %v1576
        %v1592 = vpack.c.b16 %v1589, %v1588
        %v1593 = vpack.c.b16 %v1591, %v1590
        %1596 = vmatprep.subr.bf16.mxu0 0
        %1597 = vmatpush1.bf16.msra.mxu0 %v1592
        %1598 = vmatprep.subr.bf16.mxu0 0
        %1599 = vmatpush1.bf16.msra.mxu0 %v1593
        %1600 = vmatprep.subr.bf16.mxu0 0
        %1601 = vmatpush1.bf16.msra.mxu0 0
        %1602 = vmatprep.subr.bf16.mxu0 0
        %1603 = vmatpush1.bf16.msra.mxu0 0
        %1604 = vmatprep.subr.bf16.mxu0 0
        %1605 = vmatpush1.bf16.msra.mxu0 0
        %1606 = vmatprep.subr.bf16.mxu0 0
        %1607 = vmatpush1.bf16.msra.mxu0 0
        %1608 = vmatprep.subr.bf16.mxu0 0
        %1609 = vmatpush1.bf16.msra.mxu0 0
        %1610 = vmatprep.subr.bf16.mxu0 0
        %1611 = vmatpush1.bf16.msra.mxu0 0
        %1612 = vmatprep.subr.bf16.mxu0 0
        %1613 = vmatpush1.bf16.msra.mxu0 0
        %1614 = vmatprep.subr.bf16.mxu0 0
        %1615 = vmatpush1.bf16.msra.mxu0 0
        %1616 = vmatprep.subr.bf16.mxu0 0
        %1617 = vmatpush1.bf16.msra.mxu0 0
        %1618 = vmatprep.subr.bf16.mxu0 0
        %1619 = vmatpush1.bf16.msra.mxu0 0
        %1620 = vmatprep.subr.bf16.mxu0 0
        %1621 = vmatpush1.bf16.msra.mxu0 0
        %1622 = vmatprep.subr.bf16.mxu0 0
        %1623 = vmatpush1.bf16.msra.mxu0 0
        %1624 = vmatprep.subr.bf16.mxu0 0
        %1625 = vmatpush1.bf16.msra.mxu0 0
        %1626 = vmatprep.subr.bf16.mxu0 0
        %1627 = vmatpush1.bf16.msra.mxu0 0
        %1628 = vmatprep.mubr.bf16.mxu0 0
        %1629 = vmatmul.mubr.bf16.gmra.mrb[0].mxu0 %v1530
        %v1630 = vpop.f32.mrb[0].mxu0
        %v1631 = vadd.f32 %v1582, %v1630
        %v1632 = vpop.f32.mrb[0].mxu0
        %v1633 = vpop.f32.mrb[0].mxu0
        %v1634 = vadd.f32 %v1582, %v1633
        %v1635 = vpop.f32.mrb[0].mxu0
        %1636 = vdwg.mxu0
        %v1637 = vstv %s1505
        %v1638 = vmul.f32 %v1637, %v1567
        %v1639 = vmul.f32 %v1637, %v1570
        %v1640 = vxor.u32 %v1638, 2147483648
        %v1641 = vxor.u32 %v1639, 2147483648
        %v1642 = vmul.f32 %v1640, 1.442695
        %v1643 = vpow.pop %v1642
        %v1644 = vmul.f32 %v1641, 1.442695
        %v1645 = vpow.pop %v1644
        %v1646 = vadd.f32 %v1643, 1.0
        %v1647 = vadd.f32 %v1645, 1.0
        %v1648 = vrcp.pop %v1646
        %v1649 = vmul.f32 1.0, %v1648
        %v1650 = vrcp.pop %v1647
        %v1651 = vmul.f32 1.0, %v1650
        %v1652 = vmul.f32 %v1567, %v1649
        %v1653 = vmul.f32 %v1570, %v1651
        %v1654 = vmul.f32 %v1652, %v1631
        %v1655 = vmul.f32 %v1653, %v1634
        %v1656 = vadd.f32 %v1434, %v1654
        %v1657 = vadd.f32 %v1435, %v1655
        %1658 = vst.msk [vmem:[#allocation2] sm:$0xff] %vm740, %v1656
        %1659 = vst.msk [vmem:[#allocation2 + $0x8] sm:$0xff] %vm740, %v1657
        %p1660 = scmp.eq.s32.totalorder %s33, 1
        // Predicated region
        $region93: #{llama_forward.2} parent=83 // pred_check
          %p1661 = pneg %p1660
        $region94: #{llama_forward.2} parent=83 // pred_check_branch
          %1663 = sbr.rel (%p1661) target = $region96
        $region95: #{llama_forward.2} parent=83 // pred_region
          %1664 = vst.msk [vmem:[%s723] sm:$0xff] %vm740, %v1656
          %1665 = vst.msk [vmem:[%s723 + $0x8] sm:$0xff] %vm740, %v1657
        $region96: #{llama_forward.2} parent=83 // pred_fallthru
          _
        %p1666 = scmp.lt.s32.totalorder %s32, 1
        %s1667 = scalar_select %p1666, %s32, 1
        %s1668 = smul.addr %s1667, 2
        %s1669 = smul.addr %s1668, 8
        %s1670 = scalar_lea.vmem %s16, %s1669
        // Predicated region
        $region97: #{llama_forward.2} parent=83 // pred_check
          %p1671 = pneg %p449
        $region98: #{llama_forward.2} parent=83 // pred_check_branch
          %1673 = sbr.rel (%p1671) target = $region100
        $region99: #{llama_forward.2} parent=83 // pred_region
          _
        $region100: #{llama_forward.2} parent=83 // pred_fallthru
          _
      $region84: #{llama_forward.2} parent=5 // pred_fallthru
        _
      %p1674 = scmp.le.s32.totalorder 2, %s23
      // Predicated region
      $region101: #{llama_forward.2} parent=5 // pred_check
        %p1675 = pneg %p1674
      $region102: #{llama_forward.2} parent=5 // pred_check_branch
        %1677 = sbr.rel (%p1675) target = $region104
      $region103: #{llama_forward.2} parent=5 // pred_region
        %s1678 = ssub.s32 %s23, 2
        // Predicated region
        $region105: #{llama_forward.2} parent=103 // pred_check
          %p1679 = pneg %p455
        $region106: #{llama_forward.2} parent=103 // pred_check_branch
          %1681 = sbr.rel (%p1679) target = $region108
        $region107: #{llama_forward.2} parent=103 // pred_region
          %p1682 = scmp.lt.s32.totalorder %s34, 1
          %s1683 = scalar_select %p1682, %s34, 1
          %s1684 = smul.addr %s1683, 2
          %s1685 = smul.addr %s1684, 8
          %s1686 = scalar_lea.vmem %s16, %s1685
        $region108: #{llama_forward.2} parent=103 // pred_fallthru
          _
      $region104: #{llama_forward.2} parent=5 // pred_fallthru
        _
    $region6: #{llama_forward.2} parent=1 // loop_footer
      %s27 = sadd.s32 1, %s23
    $region7: #{llama_forward.2} parent=1 // loop_footer_branch
      %22 = sbr.rel target = $region3
    $region8: #{llama_forward.2} parent=1 // loop_exit
      _
    %1687 = vsyncpa [#allocation4], 1
    %s1688 = scalar_lea.sflag [#allocation4], 1
    %1689 = vsyncpa %s1688, 1

</llo_original>
